<compile_context>
chip_gen: v5e
topology: v5e:2x2
jax: 0.10.0
libtpu: 0.0.40
codegen_flags: <defaults>
</compile_context>

<pallas_src>
import jax
import jax.numpy as jnp
from jax import lax
from jax.experimental import pallas as pl
from jax.experimental.pallas import tpu as pltpu

# ----------------------- configuration (small, synthetic) -----------------------
B, H, W = 2, 16, 16
DIM_IN = 16          # c of x_in
DIM_HEAD = 16        # dim_head
DIM_OUT = 16         # dim_out
HEADS = 2
GROUP_IDX = 0        # < 4  ->  ds = 2
DS = 2 if GROUP_IDX < 4 else (4 if GROUP_IDX < 8 else 8)

D = DIM_HEAD // HEADS           # per-head dim
N = H * W                       # full sequence length (for v)
N_DS = (H // DS) * (W // DS)    # pooled sequence length (for q, k)


# ----------------------------- in-kernel GELU (exact-ish) -----------------------
# TODO(synk): lax.erf has no guaranteed Mosaic lowering; exact-GELU's erf is
# approximated with Abramowitz&Stegun 7.1.26 (|err| <= 1.5e-7, ~f32 precision).
def _erf_approx(x):
    a1, a2, a3, a4, a5 = 0.254829592, -0.284496736, 1.421413741, -1.453152027, 1.061405429
    p = 0.3275911
    ax = jnp.abs(x)
    t = 1.0 / (1.0 + p * ax)
    poly = ((((a5 * t + a4) * t + a3) * t + a2) * t + a1) * t
    y = 1.0 - poly * jnp.exp(-ax * ax)
    return jnp.where(x >= 0, y, -y)


def _gelu_exact(x):
    return 0.5 * x * (1.0 + _erf_approx(x * 0.7071067811865476))


# ----------------------------- fused kernel --------------------------------------
def ms_msa_fused_kernel(xp_ref, xf_ref, wqk_ref, wv_ref, wproj_ref, bproj_ref,
                        wc1_ref, bc1_ref, rescale_ref, mask_ref,
                        wpe1_ref, wpe2_ref, out_ref):
    f32 = jnp.float32
    xp_t = xp_ref[0]                                    # [DIM_IN, N_DS]  pooled tokens
    xf_t = xf_ref[0]                                    # [DIM_IN, N]     all tokens

    # ---- to_q/to_k (merged weight) and to_v projections: [C_out, tokens] -------
    qk = jnp.dot(wqk_ref[...], xp_t, preferred_element_type=f32)   # [2*DIM_HEAD, N_DS]
    v = jnp.dot(wv_ref[...], xf_t, preferred_element_type=f32)     # [DIM_HEAD,   N]

    # ---- per-channel L2 normalize over the token (lane) axis -------------------
    inv_norm = 1.0 / jnp.maximum(
        jnp.sqrt(jnp.sum(qk * qk, axis=1, keepdims=True)), 1e-12)   # [2*DIM_HEAD, 1]
    qkn = qk * inv_norm
    qn = qkn[:DIM_HEAD, :]                              # [DIM_HEAD, N_DS]
    kn = qkn[DIM_HEAD:, :]                              # [DIM_HEAD, N_DS]

    # ---- spectral attention, all heads at once ---------------------------------
    # attn[dk, dq] = sum_n kn[dk, n] * qn[dq, n]   (A @ B^T, no explicit transpose)
    attn = lax.dot_general(kn, qn, (((1,), (1,)), ((), ())),
                           preferred_element_type=f32)              # [DIM_HEAD, DIM_HEAD]
    attn = attn * rescale_ref[...] + mask_ref[...]      # per-head rescale + block-diag mask
    attn = attn - jnp.max(attn, axis=-1, keepdims=True)
    attn = jnp.exp(attn)                                # off-head entries -> exactly 0
    attn = attn * (1.0 / jnp.sum(attn, axis=-1, keepdims=True))

    # ---- x = attn @ v  (cross-head terms are exactly zero via the mask) --------
    xatt = jnp.dot(attn, v, preferred_element_type=f32)             # [DIM_HEAD, N]

    # ---- proj Linear and Conv1d(kernel_size=1): channel-mixing matmuls ---------
    out_c = jnp.dot(wproj_ref[...], xatt, preferred_element_type=f32) + bproj_ref[...]
    p0 = jnp.dot(wc1_ref[...], v, preferred_element_type=f32) + bc1_ref[...]   # [DIM_OUT, N]

    # ---- depthwise 3x3 convs on the (H, W) grid flattened along lanes ----------
    lane = lax.broadcasted_iota(jnp.int32, (DIM_OUT, N), 1)
    w_of = lane % W
    m_wm1 = (w_of > 0).astype(f32)          # source pixel (w-1) exists
    m_wp1 = (w_of < W - 1).astype(f32)      # source pixel (w+1) exists
    z1 = jnp.zeros((DIM_OUT, 1), f32)
    zW = jnp.zeros((DIM_OUT, W), f32)

    def shift_r(x, k, z):                   # out[:, n] = x[:, n-k], zero fill on the left
        return jnp.concatenate([z, x[:, :N - k]], axis=1)

    def shift_l(x, k, z):                   # out[:, n] = x[:, n+k], zero fill on the right
        return jnp.concatenate([x[:, k:], z], axis=1)

    def dwconv3x3(img, w_ref):              # img [DIM_OUT, N], w_ref [3, 3, DIM_OUT, 1]
        # horizontal taps, hoisted once and reused for all three ky rows
        c_m1 = m_wm1 * shift_r(img, 1, z1)              # img[.., w-1]
        c_p1 = m_wp1 * shift_l(img, 1, z1)              # img[.., w+1]
        rows = [c_m1 * w_ref[ky, 0, :, :] + img * w_ref[ky, 1, :, :]
                + c_p1 * w_ref[ky, 2, :, :] for ky in range(3)]
        # vertical taps: whole image rows are W contiguous lanes
        return shift_r(rows[0], W, zW) + rows[1] + shift_l(rows[2], W, zW)

    g = _gelu_exact(dwconv3x3(p0, wpe1_ref))
    out_p = dwconv3x3(g, wpe2_ref)

    out_ref[0] = out_c + out_p                          # lane-dense [DIM_OUT, N] store


# ----------------------------- wrapper ------------------------------------------
def ms_msa_forward(x_in, params):
    b, h, w, c = x_in.shape

    # AvgPool2d(kernel=DS, stride=DS) as cheap glue (reshape + mean), then put
    # channels on the sublane axis / tokens on the lane axis for the kernel.
    x_pool = x_in.reshape(b, h // DS, DS, w // DS, DS, c).mean(axis=(2, 4))
    xp_t = jnp.transpose(x_pool.reshape(b, N_DS, c), (0, 2, 1))       # [b, C, N_DS]
    xf_t = jnp.transpose(x_in.reshape(b, N, c), (0, 2, 1))            # [b, C, N]

    # Kernel-layout parameters (all tiny; plain XLA glue).
    wqk_t = jnp.concatenate([params["wq"].T, params["wk"].T], axis=0)  # [2*DIM_HEAD, DIM_IN]
    wv_t = params["wv"].T                                              # [DIM_HEAD, DIM_IN]
    wproj_t = params["w_proj"].T                                       # [DIM_OUT, DIM_HEAD]
    bproj_c = params["b_proj"].reshape(DIM_OUT, 1)
    wc1_t = params["w_c1d"].T                                          # [DIM_OUT, DIM_HEAD]
    bc1_c = params["b_c1d"].reshape(DIM_OUT, 1)
    rescale_col = jnp.repeat(params["rescale"], D).reshape(DIM_HEAD, 1).astype(jnp.float32)
    head_id = jnp.arange(DIM_HEAD) // D
    mask_add = jnp.where(head_id[:, None] == head_id[None, :], 0.0, -1e30).astype(jnp.float32)
    wpe1 = params["w_pe1"][..., None]                                  # [3, 3, DIM_OUT, 1]
    wpe2 = params["w_pe2"][..., None]

    out_cn = pl.pallas_call(
        ms_msa_fused_kernel,
        grid=(b,),
        in_specs=[
            pl.BlockSpec((1, DIM_IN, N_DS), lambda i: (i, 0, 0)),      # pooled x^T
            pl.BlockSpec((1, DIM_IN, N), lambda i: (i, 0, 0)),         # flat x^T
            pl.BlockSpec((2 * DIM_HEAD, DIM_IN), lambda i: (0, 0)),    # merged wq|wk (T)
            pl.BlockSpec((DIM_HEAD, DIM_IN), lambda i: (0, 0)),        # wv (T)
            pl.BlockSpec((DIM_OUT, DIM_HEAD), lambda i: (0, 0)),       # w_proj (T)
            pl.BlockSpec((DIM_OUT, 1), lambda i: (0, 0)),              # b_proj
            pl.BlockSpec((DIM_OUT, DIM_HEAD), lambda i: (0, 0)),       # w_conv1d (T)
            pl.BlockSpec((DIM_OUT, 1), lambda i: (0, 0)),              # b_conv1d
            pl.BlockSpec((DIM_HEAD, 1), lambda i: (0, 0)),             # per-row rescale
            pl.BlockSpec((DIM_HEAD, DIM_HEAD), lambda i: (0, 0)),      # block-diag mask
            pl.BlockSpec((3, 3, DIM_OUT, 1), lambda i: (0, 0, 0, 0)),  # dw conv 1 weight
            pl.BlockSpec((3, 3, DIM_OUT, 1), lambda i: (0, 0, 0, 0)),  # dw conv 2 weight
        ],
        out_specs=pl.BlockSpec((1, DIM_OUT, N), lambda i: (i, 0, 0)),
        out_shape=jax.ShapeDtypeStruct((b, DIM_OUT, N), jnp.float32),
        compiler_params=pltpu.CompilerParams(dimension_semantics=("parallel",)),
    )(xp_t, xf_t, wqk_t, wv_t, wproj_t, bproj_c, wc1_t, bc1_c,
      rescale_col, mask_add, wpe1, wpe2)

    # [b, C, N] -> [b, h, w, C]  (plain XLA glue outside the kernel)
    return jnp.transpose(out_cn.reshape(b, DIM_OUT, h, w), (0, 2, 3, 1))


# ----------------------------- pure-JAX reference --------------------------------
def reference(x_in, p):
    b, h, w, c = x_in.shape
    xp = x_in.reshape(b, h // DS, DS, w // DS, DS, c).mean(axis=(2, 4)).reshape(b, N_DS, c)
    xf = x_in.reshape(b, N, c)
    q = xp @ p["wq"]
    k = xp @ p["wk"]
    v = xf @ p["wv"]
    head_outs = []
    for hd in range(HEADS):
        sl = slice(hd * D, (hd + 1) * D)
        qh, kh, vh = q[..., sl], k[..., sl], v[..., sl]
        qn = qh / jnp.maximum(jnp.linalg.norm(qh, axis=1, keepdims=True), 1e-12)
        kn = kh / jnp.maximum(jnp.linalg.norm(kh, axis=1, keepdims=True), 1e-12)
        attn = jnp.einsum('bnd,bne->bde', kn, qn) * p["rescale"][hd]
        attn = jax.nn.softmax(attn, axis=-1)
        head_outs.append(jnp.einsum('bnd,bed->bne', vh, attn))
    ao = jnp.concatenate(head_outs, axis=-1)
    outc = ao @ p["w_proj"] + p["b_proj"]
    p0 = v @ p["w_c1d"] + p["b_c1d"]
    p0img = p0.reshape(b, h, w, DIM_OUT)

    def dw(img, wt):
        pad = jnp.pad(img, ((0, 0), (1, 1), (1, 1), (0, 0)))
        return sum(pad[:, ky:ky + h, kx:kx + w, :] * wt[ky, kx]
                   for ky in range(3) for kx in range(3))

    g_in = dw(p0img, p["w_pe1"])
    g = 0.5 * g_in * (1.0 + jax.scipy.special.erf(g_in / jnp.sqrt(2.0)))
    outp = dw(g, p["w_pe2"])
    return outc.reshape(b, h, w, DIM_OUT) + outp


# ----------------------------- main ----------------------------------------------
if __name__ == "__main__":
    key = jax.random.PRNGKey(0)
    ks = jax.random.split(key, 12)

    def rnd(k, shape, scale=0.2):
        return scale * jax.random.normal(k, shape, jnp.float32)

    params = {
        "wq": rnd(ks[0], (DIM_IN, DIM_HEAD)),
        "wk": rnd(ks[1], (DIM_IN, DIM_HEAD)),
        "wv": rnd(ks[2], (DIM_IN, DIM_HEAD)),
        # module inits rescale to ones(heads,1,1); perturb so it is exercised
        "rescale": jnp.ones((HEADS,), jnp.float32) + 0.1 * jax.random.normal(ks[3], (HEADS,), jnp.float32),
        "w_proj": rnd(ks[4], (DIM_HEAD, DIM_OUT)),
        "b_proj": rnd(ks[5], (1, DIM_OUT)),
        "w_c1d": rnd(ks[6], (DIM_HEAD, DIM_OUT)),   # Conv1d(dim_head->dim_out, k=1) weight (transposed)
        "b_c1d": rnd(ks[7], (1, DIM_OUT)),
        "w_pe1": rnd(ks[8], (3, 3, DIM_OUT)),       # depthwise 3x3 (groups=dim_out), HWC layout
        "w_pe2": rnd(ks[9], (3, 3, DIM_OUT)),
    }

    x_in = jax.random.normal(ks[10], (B, H, W, DIM_IN), jnp.float32)

    fwd = jax.jit(ms_msa_forward)
    out = fwd(x_in, params)
    out = jax.block_until_ready(out)

    ref = reference(x_in, params)
    assert out.shape == (B, H, W, DIM_OUT), out.shape
    max_err = float(jnp.max(jnp.abs(out - ref)))
    assert max_err < 2e-3, f"max abs err {max_err}"
    print("KERNEL_OK")
</pallas_src>

<mosaic_0001>
module attributes {stable_mosaic.version = 11 : i64} {
  func.func @ms_msa_fused_kernel(%arg0: i32, %arg1: memref<1x16x64xf32, #tpu.memory_space<vmem>>, %arg2: memref<1x16x256xf32, #tpu.memory_space<vmem>>, %arg3: memref<32x16xf32, #tpu.memory_space<vmem>>, %arg4: memref<16x16xf32, #tpu.memory_space<vmem>>, %arg5: memref<16x16xf32, #tpu.memory_space<vmem>>, %arg6: memref<16x1xf32, #tpu.memory_space<vmem>>, %arg7: memref<16x16xf32, #tpu.memory_space<vmem>>, %arg8: memref<16x1xf32, #tpu.memory_space<vmem>>, %arg9: memref<16x1xf32, #tpu.memory_space<vmem>>, %arg10: memref<16x16xf32, #tpu.memory_space<vmem>>, %arg11: memref<3x3x16x1xf32, #tpu.memory_space<vmem>>, %arg12: memref<3x3x16x1xf32, #tpu.memory_space<vmem>>, %arg13: memref<1x16x256xf32, #tpu.memory_space<vmem>>) attributes {dimension_semantics = [#tpu.dimension_semantics<parallel>], iteration_bounds = array<i64: 2>, scalar_prefetch = 0 : i64, scratch_operands = 0 : i64, tpu.core_type = #tpu.core_type<tc>, window_params = [{transform_indices = @transform_0, window_bounds = array<i64: 1, 16, 64>}, {transform_indices = @transform_1, window_bounds = array<i64: 1, 16, 256>}, {pipeline_mode = #tpu.pipeline_mode<synchronous>, transform_indices = @transform_2, window_bounds = array<i64: 32, 16>}, {pipeline_mode = #tpu.pipeline_mode<synchronous>, transform_indices = @transform_3, window_bounds = array<i64: 16, 16>}, {pipeline_mode = #tpu.pipeline_mode<synchronous>, transform_indices = @transform_4, window_bounds = array<i64: 16, 16>}, {pipeline_mode = #tpu.pipeline_mode<synchronous>, transform_indices = @transform_5, window_bounds = array<i64: 16, 1>}, {pipeline_mode = #tpu.pipeline_mode<synchronous>, transform_indices = @transform_6, window_bounds = array<i64: 16, 16>}, {pipeline_mode = #tpu.pipeline_mode<synchronous>, transform_indices = @transform_7, window_bounds = array<i64: 16, 1>}, {pipeline_mode = #tpu.pipeline_mode<synchronous>, transform_indices = @transform_8, window_bounds = array<i64: 16, 1>}, {pipeline_mode = #tpu.pipeline_mode<synchronous>, transform_indices = @transform_9, window_bounds = array<i64: 16, 16>}, {pipeline_mode = #tpu.pipeline_mode<synchronous>, transform_indices = @transform_10, window_bounds = array<i64: 3, 3, 16, 1>}, {pipeline_mode = #tpu.pipeline_mode<synchronous>, transform_indices = @transform_11, window_bounds = array<i64: 3, 3, 16, 1>}, {transform_indices = @transform_12, window_bounds = array<i64: 1, 16, 256>}]} {
    %c0 = arith.constant 0 : index
    %c0_0 = arith.constant 0 : index
    %c0_1 = arith.constant 0 : index
    %0 = vector.load %arg1[%c0, %c0_0, %c0_1] : memref<1x16x64xf32, #tpu.memory_space<vmem>>, vector<1x16x64xf32>
    %1 = vector.shape_cast %0 : vector<1x16x64xf32> to vector<16x64xf32>
    %c0_2 = arith.constant 0 : index
    %c0_3 = arith.constant 0 : index
    %c0_4 = arith.constant 0 : index
    %2 = vector.load %arg2[%c0_2, %c0_3, %c0_4] : memref<1x16x256xf32, #tpu.memory_space<vmem>>, vector<1x16x256xf32>
    %3 = vector.shape_cast %2 : vector<1x16x256xf32> to vector<16x256xf32>
    %c0_5 = arith.constant 0 : index
    %c0_6 = arith.constant 0 : index
    %4 = vector.load %arg3[%c0_5, %c0_6] : memref<32x16xf32, #tpu.memory_space<vmem>>, vector<32x16xf32>
    %cst = arith.constant dense<0.000000e+00> : vector<32x64xf32>
    %5 = tpu.matmul %4, %1, %cst {dimension_numbers = #tpu.dot_dimension_numbers<[1], [0], [0], [1], [0, 0, 1, 1], [], []>} : vector<32x16xf32>, vector<16x64xf32>, vector<32x64xf32> -> vector<32x64xf32>
    %c0_7 = arith.constant 0 : index
    %c0_8 = arith.constant 0 : index
    %6 = vector.load %arg4[%c0_7, %c0_8] : memref<16x16xf32, #tpu.memory_space<vmem>>, vector<16x16xf32>
    %cst_9 = arith.constant dense<0.000000e+00> : vector<16x256xf32>
    %7 = tpu.matmul %6, %3, %cst_9 {dimension_numbers = #tpu.dot_dimension_numbers<[1], [0], [0], [1], [0, 0, 1, 1], [], []>} : vector<16x16xf32>, vector<16x256xf32>, vector<16x256xf32> -> vector<16x256xf32>
    %8 = arith.mulf %5, %5 : vector<32x64xf32>
    %cst_10 = arith.constant dense<0.000000e+00> : vector<32xf32>
    %9 = vector.multi_reduction <add>, %8, %cst_10 [1] : vector<32x64xf32> to vector<32xf32>
    %10 = vector.shape_cast %9 : vector<32xf32> to vector<32x1xf32>
    %11 = math.sqrt %10 : vector<32x1xf32>
    %cst_11 = arith.constant 9.99999996E-13 : f32
    %12 = vector.broadcast %cst_11 : f32 to vector<32x1xf32>
    %13 = arith.maximumf %11, %12 : vector<32x1xf32>
    %cst_12 = arith.constant 1.000000e+00 : f32
    %14 = vector.broadcast %cst_12 : f32 to vector<32x1xf32>
    %15 = arith.divf %14, %13 : vector<32x1xf32>
    %16 = vector.broadcast %15 : vector<32x1xf32> to vector<32x64xf32>
    %17 = arith.mulf %5, %16 : vector<32x64xf32>
    %18 = vector.extract_strided_slice %17 {offsets = [0, 0], sizes = [16, 64], strides = [1, 1]} : vector<32x64xf32> to vector<16x64xf32>
    %19 = vector.extract_strided_slice %17 {offsets = [16, 0], sizes = [16, 64], strides = [1, 1]} : vector<32x64xf32> to vector<16x64xf32>
    %cst_13 = arith.constant dense<0.000000e+00> : vector<16x16xf32>
    %20 = tpu.matmul %19, %18, %cst_13 {dimension_numbers = #tpu.dot_dimension_numbers<[1], [1], [0], [0], [0, 0, 1, 0], [], []>} : vector<16x64xf32>, vector<16x64xf32>, vector<16x16xf32> -> vector<16x16xf32>
    %c0_14 = arith.constant 0 : index
    %c0_15 = arith.constant 0 : index
    %21 = vector.load %arg9[%c0_14, %c0_15] : memref<16x1xf32, #tpu.memory_space<vmem>>, vector<16x1xf32>
    %22 = vector.broadcast %21 : vector<16x1xf32> to vector<16x16xf32>
    %23 = arith.mulf %20, %22 : vector<16x16xf32>
    %c0_16 = arith.constant 0 : index
    %c0_17 = arith.constant 0 : index
    %24 = vector.load %arg10[%c0_16, %c0_17] : memref<16x16xf32, #tpu.memory_space<vmem>>, vector<16x16xf32>
    %25 = arith.addf %23, %24 : vector<16x16xf32>
    %cst_18 = arith.constant dense<0xFF800000> : vector<16xf32>
    %26 = vector.multi_reduction <maximumf>, %25, %cst_18 [1] : vector<16x16xf32> to vector<16xf32>
    %27 = vector.shape_cast %26 : vector<16xf32> to vector<16x1xf32>
    %28 = vector.broadcast %27 : vector<16x1xf32> to vector<16x16xf32>
    %29 = arith.subf %25, %28 : vector<16x16xf32>
    %30 = math.exp %29 : vector<16x16xf32>
    %cst_19 = arith.constant dense<0.000000e+00> : vector<16xf32>
    %31 = vector.multi_reduction <add>, %30, %cst_19 [1] : vector<16x16xf32> to vector<16xf32>
    %32 = vector.shape_cast %31 : vector<16xf32> to vector<16x1xf32>
    %cst_20 = arith.constant 1.000000e+00 : f32
    %33 = vector.broadcast %cst_20 : f32 to vector<16x1xf32>
    %34 = arith.divf %33, %32 : vector<16x1xf32>
    %35 = vector.broadcast %34 : vector<16x1xf32> to vector<16x16xf32>
    %36 = arith.mulf %30, %35 : vector<16x16xf32>
    %cst_21 = arith.constant dense<0.000000e+00> : vector<16x256xf32>
    %37 = tpu.matmul %36, %7, %cst_21 {dimension_numbers = #tpu.dot_dimension_numbers<[1], [0], [0], [1], [0, 0, 1, 1], [], []>} : vector<16x16xf32>, vector<16x256xf32>, vector<16x256xf32> -> vector<16x256xf32>
    %c0_22 = arith.constant 0 : index
    %c0_23 = arith.constant 0 : index
    %38 = vector.load %arg5[%c0_22, %c0_23] : memref<16x16xf32, #tpu.memory_space<vmem>>, vector<16x16xf32>
    %cst_24 = arith.constant dense<0.000000e+00> : vector<16x256xf32>
    %39 = tpu.matmul %38, %37, %cst_24 {dimension_numbers = #tpu.dot_dimension_numbers<[1], [0], [0], [1], [0, 0, 1, 1], [], []>} : vector<16x16xf32>, vector<16x256xf32>, vector<16x256xf32> -> vector<16x256xf32>
    %c0_25 = arith.constant 0 : index
    %c0_26 = arith.constant 0 : index
    %40 = vector.load %arg6[%c0_25, %c0_26] : memref<16x1xf32, #tpu.memory_space<vmem>>, vector<16x1xf32>
    %41 = vector.broadcast %40 : vector<16x1xf32> to vector<16x256xf32>
    %42 = arith.addf %39, %41 : vector<16x256xf32>
    %c0_27 = arith.constant 0 : index
    %c0_28 = arith.constant 0 : index
    %43 = vector.load %arg7[%c0_27, %c0_28] : memref<16x16xf32, #tpu.memory_space<vmem>>, vector<16x16xf32>
    %cst_29 = arith.constant dense<0.000000e+00> : vector<16x256xf32>
    %44 = tpu.matmul %43, %7, %cst_29 {dimension_numbers = #tpu.dot_dimension_numbers<[1], [0], [0], [1], [0, 0, 1, 1], [], []>} : vector<16x16xf32>, vector<16x256xf32>, vector<16x256xf32> -> vector<16x256xf32>
    %c0_30 = arith.constant 0 : index
    %c0_31 = arith.constant 0 : index
    %45 = vector.load %arg8[%c0_30, %c0_31] : memref<16x1xf32, #tpu.memory_space<vmem>>, vector<16x1xf32>
    %46 = vector.broadcast %45 : vector<16x1xf32> to vector<16x256xf32>
    %47 = arith.addf %44, %46 : vector<16x256xf32>
    %48 = tpu.iota {dimensions = array<i32: 1>} : vector<16x256xi32>
    %c16_i32 = arith.constant 16 : i32
    %c0_i32 = arith.constant 0 : i32
    %49 = arith.cmpi eq, %c16_i32, %c0_i32 : i32
    %c1_i32 = arith.constant 1 : i32
    %50 = arith.select %49, %c1_i32, %c16_i32 : i32
    %51 = vector.broadcast %50 : i32 to vector<16x256xi32>
    %52 = arith.remsi %48, %51 : vector<16x256xi32>
    %c0_i32_32 = arith.constant 0 : i32
    %53 = vector.broadcast %c0_i32_32 : i32 to vector<16x256xi32>
    %54 = arith.cmpi ne, %52, %53 : vector<16x256xi32>
    %c0_i32_33 = arith.constant 0 : i32
    %55 = vector.broadcast %c0_i32_33 : i32 to vector<16x256xi32>
    %56 = arith.cmpi slt, %52, %55 : vector<16x256xi32>
    %c0_i32_34 = arith.constant 0 : i32
    %57 = arith.cmpi slt, %50, %c0_i32_34 : i32
    %58 = vector.broadcast %57 : i1 to vector<16x256xi1>
    %59 = vector.broadcast %58 : vector<16x256xi1> to vector<16x256xi1>
    %60 = arith.xori %56, %59 : vector<16x256xi1>
    %61 = arith.andi %60, %54 : vector<16x256xi1>
    %62 = vector.broadcast %50 : i32 to vector<16x256xi32>
    %63 = arith.addi %52, %62 : vector<16x256xi32>
    %64 = arith.select %61, %63, %52 : vector<16x256xi1>, vector<16x256xi32>
    %c0_i32_35 = arith.constant 0 : i32
    %65 = vector.broadcast %c0_i32_35 : i32 to vector<16x256xi32>
    %66 = arith.cmpi sgt, %64, %65 : vector<16x256xi32>
    %67 = arith.extui %66 : vector<16x256xi1> to vector<16x256xi32>
    %68 = arith.sitofp %67 : vector<16x256xi32> to vector<16x256xf32>
    %c15_i32 = arith.constant 15 : i32
    %69 = vector.broadcast %c15_i32 : i32 to vector<16x256xi32>
    %70 = arith.cmpi slt, %64, %69 : vector<16x256xi32>
    %71 = arith.extui %70 : vector<16x256xi1> to vector<16x256xi32>
    %72 = arith.sitofp %71 : vector<16x256xi32> to vector<16x256xf32>
    %cst_36 = arith.constant 0.000000e+00 : f32
    %73 = vector.broadcast %cst_36 : f32 to vector<16x1xf32>
    %cst_37 = arith.constant 0.000000e+00 : f32
    %74 = vector.broadcast %cst_37 : f32 to vector<16x16xf32>
    %75 = vector.extract_strided_slice %47 {offsets = [0, 0], sizes = [16, 255], strides = [1, 1]} : vector<16x256xf32> to vector<16x255xf32>
    %76 = tpu.concatenate %73, %75 in 1 : vector<16x1xf32>, vector<16x255xf32> -> vector<16x256xf32>
    %77 = arith.mulf %68, %76 : vector<16x256xf32>
    %78 = vector.extract_strided_slice %47 {offsets = [0, 1], sizes = [16, 255], strides = [1, 1]} : vector<16x256xf32> to vector<16x255xf32>
    %79 = tpu.concatenate %78, %73 in 1 : vector<16x255xf32>, vector<16x1xf32> -> vector<16x256xf32>
    %80 = arith.mulf %72, %79 : vector<16x256xf32>
    %c0_38 = arith.constant 0 : index
    %c0_39 = arith.constant 0 : index
    %c0_40 = arith.constant 0 : index
    %c0_41 = arith.constant 0 : index
    %81 = vector.load %arg11[%c0_38, %c0_39, %c0_40, %c0_41] : memref<3x3x16x1xf32, #tpu.memory_space<vmem>>, vector<1x1x16x1xf32>
    %82 = vector.shape_cast %81 : vector<1x1x16x1xf32> to vector<16x1xf32>
    %83 = vector.broadcast %82 : vector<16x1xf32> to vector<16x256xf32>
    %84 = arith.mulf %77, %83 : vector<16x256xf32>
    %c0_42 = arith.constant 0 : index
    %c1 = arith.constant 1 : index
    %c0_43 = arith.constant 0 : index
    %c0_44 = arith.constant 0 : index
    %85 = vector.load %arg11[%c0_42, %c1, %c0_43, %c0_44] : memref<3x3x16x1xf32, #tpu.memory_space<vmem>>, vector<1x1x16x1xf32>
    %86 = vector.shape_cast %85 : vector<1x1x16x1xf32> to vector<16x1xf32>
    %87 = vector.broadcast %86 : vector<16x1xf32> to vector<16x256xf32>
    %88 = arith.mulf %47, %87 : vector<16x256xf32>
    %89 = arith.addf %84, %88 : vector<16x256xf32>
    %c0_45 = arith.constant 0 : index
    %c2 = arith.constant 2 : index
    %c0_46 = arith.constant 0 : index
    %c0_47 = arith.constant 0 : index
    %90 = vector.load %arg11[%c0_45, %c2, %c0_46, %c0_47] : memref<3x3x16x1xf32, #tpu.memory_space<vmem>>, vector<1x1x16x1xf32>
    %91 = vector.shape_cast %90 : vector<1x1x16x1xf32> to vector<16x1xf32>
    %92 = vector.broadcast %91 : vector<16x1xf32> to vector<16x256xf32>
    %93 = arith.mulf %80, %92 : vector<16x256xf32>
    %94 = arith.addf %89, %93 : vector<16x256xf32>
    %c1_48 = arith.constant 1 : index
    %c0_49 = arith.constant 0 : index
    %c0_50 = arith.constant 0 : index
    %c0_51 = arith.constant 0 : index
    %95 = vector.load %arg11[%c1_48, %c0_49, %c0_50, %c0_51] : memref<3x3x16x1xf32, #tpu.memory_space<vmem>>, vector<1x1x16x1xf32>
    %96 = vector.shape_cast %95 : vector<1x1x16x1xf32> to vector<16x1xf32>
    %97 = vector.broadcast %96 : vector<16x1xf32> to vector<16x256xf32>
    %98 = arith.mulf %77, %97 : vector<16x256xf32>
    %c1_52 = arith.constant 1 : index
    %c1_53 = arith.constant 1 : index
    %c0_54 = arith.constant 0 : index
    %c0_55 = arith.constant 0 : index
    %99 = vector.load %arg11[%c1_52, %c1_53, %c0_54, %c0_55] : memref<3x3x16x1xf32, #tpu.memory_space<vmem>>, vector<1x1x16x1xf32>
    %100 = vector.shape_cast %99 : vector<1x1x16x1xf32> to vector<16x1xf32>
    %101 = vector.broadcast %100 : vector<16x1xf32> to vector<16x256xf32>
    %102 = arith.mulf %47, %101 : vector<16x256xf32>
    %103 = arith.addf %98, %102 : vector<16x256xf32>
    %c1_56 = arith.constant 1 : index
    %c2_57 = arith.constant 2 : index
    %c0_58 = arith.constant 0 : index
    %c0_59 = arith.constant 0 : index
    %104 = vector.load %arg11[%c1_56, %c2_57, %c0_58, %c0_59] : memref<3x3x16x1xf32, #tpu.memory_space<vmem>>, vector<1x1x16x1xf32>
    %105 = vector.shape_cast %104 : vector<1x1x16x1xf32> to vector<16x1xf32>
    %106 = vector.broadcast %105 : vector<16x1xf32> to vector<16x256xf32>
    %107 = arith.mulf %80, %106 : vector<16x256xf32>
    %108 = arith.addf %103, %107 : vector<16x256xf32>
    %c2_60 = arith.constant 2 : index
    %c0_61 = arith.constant 0 : index
    %c0_62 = arith.constant 0 : index
    %c0_63 = arith.constant 0 : index
    %109 = vector.load %arg11[%c2_60, %c0_61, %c0_62, %c0_63] : memref<3x3x16x1xf32, #tpu.memory_space<vmem>>, vector<1x1x16x1xf32>
    %110 = vector.shape_cast %109 : vector<1x1x16x1xf32> to vector<16x1xf32>
    %111 = vector.broadcast %110 : vector<16x1xf32> to vector<16x256xf32>
    %112 = arith.mulf %77, %111 : vector<16x256xf32>
    %c2_64 = arith.constant 2 : index
    %c1_65 = arith.constant 1 : index
    %c0_66 = arith.constant 0 : index
    %c0_67 = arith.constant 0 : index
    %113 = vector.load %arg11[%c2_64, %c1_65, %c0_66, %c0_67] : memref<3x3x16x1xf32, #tpu.memory_space<vmem>>, vector<1x1x16x1xf32>
    %114 = vector.shape_cast %113 : vector<1x1x16x1xf32> to vector<16x1xf32>
    %115 = vector.broadcast %114 : vector<16x1xf32> to vector<16x256xf32>
    %116 = arith.mulf %47, %115 : vector<16x256xf32>
    %117 = arith.addf %112, %116 : vector<16x256xf32>
    %c2_68 = arith.constant 2 : index
    %c2_69 = arith.constant 2 : index
    %c0_70 = arith.constant 0 : index
    %c0_71 = arith.constant 0 : index
    %118 = vector.load %arg11[%c2_68, %c2_69, %c0_70, %c0_71] : memref<3x3x16x1xf32, #tpu.memory_space<vmem>>, vector<1x1x16x1xf32>
    %119 = vector.shape_cast %118 : vector<1x1x16x1xf32> to vector<16x1xf32>
    %120 = vector.broadcast %119 : vector<16x1xf32> to vector<16x256xf32>
    %121 = arith.mulf %80, %120 : vector<16x256xf32>
    %122 = arith.addf %117, %121 : vector<16x256xf32>
    %123 = vector.extract_strided_slice %94 {offsets = [0, 0], sizes = [16, 240], strides = [1, 1]} : vector<16x256xf32> to vector<16x240xf32>
    %124 = tpu.concatenate %74, %123 in 1 : vector<16x16xf32>, vector<16x240xf32> -> vector<16x256xf32>
    %125 = arith.addf %124, %108 : vector<16x256xf32>
    %126 = vector.extract_strided_slice %122 {offsets = [0, 16], sizes = [16, 240], strides = [1, 1]} : vector<16x256xf32> to vector<16x240xf32>
    %127 = tpu.concatenate %126, %74 in 1 : vector<16x240xf32>, vector<16x16xf32> -> vector<16x256xf32>
    %128 = arith.addf %125, %127 : vector<16x256xf32>
    %cst_72 = arith.constant 5.000000e-01 : f32
    %129 = vector.broadcast %cst_72 : f32 to vector<16x256xf32>
    %130 = arith.mulf %129, %128 : vector<16x256xf32>
    %cst_73 = arith.constant 0.707106769 : f32
    %131 = vector.broadcast %cst_73 : f32 to vector<16x256xf32>
    %132 = arith.mulf %128, %131 : vector<16x256xf32>
    %133 = math.absf %132 : vector<16x256xf32>
    %cst_74 = arith.constant 0.327591091 : f32
    %134 = vector.broadcast %cst_74 : f32 to vector<16x256xf32>
    %135 = arith.mulf %134, %133 : vector<16x256xf32>
    %cst_75 = arith.constant 1.000000e+00 : f32
    %136 = vector.broadcast %cst_75 : f32 to vector<16x256xf32>
    %137 = arith.addf %136, %135 : vector<16x256xf32>
    %cst_76 = arith.constant 1.000000e+00 : f32
    %138 = vector.broadcast %cst_76 : f32 to vector<16x256xf32>
    %139 = arith.divf %138, %137 : vector<16x256xf32>
    %cst_77 = arith.constant 1.06140542 : f32
    %140 = vector.broadcast %cst_77 : f32 to vector<16x256xf32>
    %141 = arith.mulf %140, %139 : vector<16x256xf32>
    %cst_78 = arith.constant -1.45315206 : f32
    %142 = vector.broadcast %cst_78 : f32 to vector<16x256xf32>
    %143 = arith.addf %141, %142 : vector<16x256xf32>
    %144 = arith.mulf %143, %139 : vector<16x256xf32>
    %cst_79 = arith.constant 1.42141378 : f32
    %145 = vector.broadcast %cst_79 : f32 to vector<16x256xf32>
    %146 = arith.addf %144, %145 : vector<16x256xf32>
    %147 = arith.mulf %146, %139 : vector<16x256xf32>
    %cst_80 = arith.constant -0.284496725 : f32
    %148 = vector.broadcast %cst_80 : f32 to vector<16x256xf32>
    %149 = arith.addf %147, %148 : vector<16x256xf32>
    %150 = arith.mulf %149, %139 : vector<16x256xf32>
    %cst_81 = arith.constant 0.254829586 : f32
    %151 = vector.broadcast %cst_81 : f32 to vector<16x256xf32>
    %152 = arith.addf %150, %151 : vector<16x256xf32>
    %153 = arith.mulf %152, %139 : vector<16x256xf32>
    %cst_82 = arith.constant 0.000000e+00 : f32
    %154 = vector.broadcast %cst_82 : f32 to vector<16x256xf32>
    %155 = arith.subf %154, %133 : vector<16x256xf32>
    %156 = arith.mulf %155, %133 : vector<16x256xf32>
    %157 = math.exp %156 : vector<16x256xf32>
    %158 = arith.mulf %153, %157 : vector<16x256xf32>
    %cst_83 = arith.constant 1.000000e+00 : f32
    %159 = vector.broadcast %cst_83 : f32 to vector<16x256xf32>
    %160 = arith.subf %159, %158 : vector<16x256xf32>
    %cst_84 = arith.constant 0.000000e+00 : f32
    %161 = vector.broadcast %cst_84 : f32 to vector<16x256xf32>
    %162 = arith.cmpf oge, %132, %161 : vector<16x256xf32>
    %cst_85 = arith.constant 0.000000e+00 : f32
    %163 = vector.broadcast %cst_85 : f32 to vector<16x256xf32>
    %164 = arith.subf %163, %160 : vector<16x256xf32>
    %165 = arith.select %162, %160, %164 : vector<16x256xi1>, vector<16x256xf32>
    %cst_86 = arith.constant 1.000000e+00 : f32
    %166 = vector.broadcast %cst_86 : f32 to vector<16x256xf32>
    %167 = arith.addf %166, %165 : vector<16x256xf32>
    %168 = arith.mulf %130, %167 : vector<16x256xf32>
    %169 = vector.extract_strided_slice %168 {offsets = [0, 0], sizes = [16, 255], strides = [1, 1]} : vector<16x256xf32> to vector<16x255xf32>
    %170 = tpu.concatenate %73, %169 in 1 : vector<16x1xf32>, vector<16x255xf32> -> vector<16x256xf32>
    %171 = arith.mulf %68, %170 : vector<16x256xf32>
    %172 = vector.extract_strided_slice %168 {offsets = [0, 1], sizes = [16, 255], strides = [1, 1]} : vector<16x256xf32> to vector<16x255xf32>
    %173 = tpu.concatenate %172, %73 in 1 : vector<16x255xf32>, vector<16x1xf32> -> vector<16x256xf32>
    %174 = arith.mulf %72, %173 : vector<16x256xf32>
    %c0_87 = arith.constant 0 : index
    %c0_88 = arith.constant 0 : index
    %c0_89 = arith.constant 0 : index
    %c0_90 = arith.constant 0 : index
    %175 = vector.load %arg12[%c0_87, %c0_88, %c0_89, %c0_90] : memref<3x3x16x1xf32, #tpu.memory_space<vmem>>, vector<1x1x16x1xf32>
    %176 = vector.shape_cast %175 : vector<1x1x16x1xf32> to vector<16x1xf32>
    %177 = vector.broadcast %176 : vector<16x1xf32> to vector<16x256xf32>
    %178 = arith.mulf %171, %177 : vector<16x256xf32>
    %c0_91 = arith.constant 0 : index
    %c1_92 = arith.constant 1 : index
    %c0_93 = arith.constant 0 : index
    %c0_94 = arith.constant 0 : index
    %179 = vector.load %arg12[%c0_91, %c1_92, %c0_93, %c0_94] : memref<3x3x16x1xf32, #tpu.memory_space<vmem>>, vector<1x1x16x1xf32>
    %180 = vector.shape_cast %179 : vector<1x1x16x1xf32> to vector<16x1xf32>
    %181 = vector.broadcast %180 : vector<16x1xf32> to vector<16x256xf32>
    %182 = arith.mulf %168, %181 : vector<16x256xf32>
    %183 = arith.addf %178, %182 : vector<16x256xf32>
    %c0_95 = arith.constant 0 : index
    %c2_96 = arith.constant 2 : index
    %c0_97 = arith.constant 0 : index
    %c0_98 = arith.constant 0 : index
    %184 = vector.load %arg12[%c0_95, %c2_96, %c0_97, %c0_98] : memref<3x3x16x1xf32, #tpu.memory_space<vmem>>, vector<1x1x16x1xf32>
    %185 = vector.shape_cast %184 : vector<1x1x16x1xf32> to vector<16x1xf32>
    %186 = vector.broadcast %185 : vector<16x1xf32> to vector<16x256xf32>
    %187 = arith.mulf %174, %186 : vector<16x256xf32>
    %188 = arith.addf %183, %187 : vector<16x256xf32>
    %c1_99 = arith.constant 1 : index
    %c0_100 = arith.constant 0 : index
    %c0_101 = arith.constant 0 : index
    %c0_102 = arith.constant 0 : index
    %189 = vector.load %arg12[%c1_99, %c0_100, %c0_101, %c0_102] : memref<3x3x16x1xf32, #tpu.memory_space<vmem>>, vector<1x1x16x1xf32>
    %190 = vector.shape_cast %189 : vector<1x1x16x1xf32> to vector<16x1xf32>
    %191 = vector.broadcast %190 : vector<16x1xf32> to vector<16x256xf32>
    %192 = arith.mulf %171, %191 : vector<16x256xf32>
    %c1_103 = arith.constant 1 : index
    %c1_104 = arith.constant 1 : index
    %c0_105 = arith.constant 0 : index
    %c0_106 = arith.constant 0 : index
    %193 = vector.load %arg12[%c1_103, %c1_104, %c0_105, %c0_106] : memref<3x3x16x1xf32, #tpu.memory_space<vmem>>, vector<1x1x16x1xf32>
    %194 = vector.shape_cast %193 : vector<1x1x16x1xf32> to vector<16x1xf32>
    %195 = vector.broadcast %194 : vector<16x1xf32> to vector<16x256xf32>
    %196 = arith.mulf %168, %195 : vector<16x256xf32>
    %197 = arith.addf %192, %196 : vector<16x256xf32>
    %c1_107 = arith.constant 1 : index
    %c2_108 = arith.constant 2 : index
    %c0_109 = arith.constant 0 : index
    %c0_110 = arith.constant 0 : index
    %198 = vector.load %arg12[%c1_107, %c2_108, %c0_109, %c0_110] : memref<3x3x16x1xf32, #tpu.memory_space<vmem>>, vector<1x1x16x1xf32>
    %199 = vector.shape_cast %198 : vector<1x1x16x1xf32> to vector<16x1xf32>
    %200 = vector.broadcast %199 : vector<16x1xf32> to vector<16x256xf32>
    %201 = arith.mulf %174, %200 : vector<16x256xf32>
    %202 = arith.addf %197, %201 : vector<16x256xf32>
    %c2_111 = arith.constant 2 : index
    %c0_112 = arith.constant 0 : index
    %c0_113 = arith.constant 0 : index
    %c0_114 = arith.constant 0 : index
    %203 = vector.load %arg12[%c2_111, %c0_112, %c0_113, %c0_114] : memref<3x3x16x1xf32, #tpu.memory_space<vmem>>, vector<1x1x16x1xf32>
    %204 = vector.shape_cast %203 : vector<1x1x16x1xf32> to vector<16x1xf32>
    %205 = vector.broadcast %204 : vector<16x1xf32> to vector<16x256xf32>
    %206 = arith.mulf %171, %205 : vector<16x256xf32>
    %c2_115 = arith.constant 2 : index
    %c1_116 = arith.constant 1 : index
    %c0_117 = arith.constant 0 : index
    %c0_118 = arith.constant 0 : index
    %207 = vector.load %arg12[%c2_115, %c1_116, %c0_117, %c0_118] : memref<3x3x16x1xf32, #tpu.memory_space<vmem>>, vector<1x1x16x1xf32>
    %208 = vector.shape_cast %207 : vector<1x1x16x1xf32> to vector<16x1xf32>
    %209 = vector.broadcast %208 : vector<16x1xf32> to vector<16x256xf32>
    %210 = arith.mulf %168, %209 : vector<16x256xf32>
    %211 = arith.addf %206, %210 : vector<16x256xf32>
    %c2_119 = arith.constant 2 : index
    %c2_120 = arith.constant 2 : index
    %c0_121 = arith.constant 0 : index
    %c0_122 = arith.constant 0 : index
    %212 = vector.load %arg12[%c2_119, %c2_120, %c0_121, %c0_122] : memref<3x3x16x1xf32, #tpu.memory_space<vmem>>, vector<1x1x16x1xf32>
    %213 = vector.shape_cast %212 : vector<1x1x16x1xf32> to vector<16x1xf32>
    %214 = vector.broadcast %213 : vector<16x1xf32> to vector<16x256xf32>
    %215 = arith.mulf %174, %214 : vector<16x256xf32>
    %216 = arith.addf %211, %215 : vector<16x256xf32>
    %217 = vector.extract_strided_slice %188 {offsets = [0, 0], sizes = [16, 240], strides = [1, 1]} : vector<16x256xf32> to vector<16x240xf32>
    %218 = tpu.concatenate %74, %217 in 1 : vector<16x16xf32>, vector<16x240xf32> -> vector<16x256xf32>
    %219 = arith.addf %218, %202 : vector<16x256xf32>
    %220 = vector.extract_strided_slice %216 {offsets = [0, 16], sizes = [16, 240], strides = [1, 1]} : vector<16x256xf32> to vector<16x240xf32>
    %221 = tpu.concatenate %220, %74 in 1 : vector<16x240xf32>, vector<16x16xf32> -> vector<16x256xf32>
    %222 = arith.addf %219, %221 : vector<16x256xf32>
    %223 = arith.addf %42, %222 : vector<16x256xf32>
    %c0_123 = arith.constant 0 : index
    %c0_124 = arith.constant 0 : index
    %c0_125 = arith.constant 0 : index
    %224 = vector.load %arg13[%c0_123, %c0_124, %c0_125] : memref<1x16x256xf32, #tpu.memory_space<vmem>>, vector<1x16x256xf32>
    %225 = vector.shape_cast %224 : vector<1x16x256xf32> to vector<16x256xf32>
    %226 = vector.shape_cast %223 : vector<16x256xf32> to vector<1x16x256xf32>
    tpu.vector_store %arg13[%c0_123, %c0_124, %c0_125], %226 {strides = array<i32>} : memref<1x16x256xf32, #tpu.memory_space<vmem>>, vector<1x16x256xf32>,
    return
  }
  func.func @transform_0(%arg0: i32) -> (i32, i32, i32) {
    %c0_i32 = arith.constant 0 : i32
    %c0_i32_0 = arith.constant 0 : i32
    %c0_i32_1 = arith.constant 0 : i32
    return %arg0, %c0_i32, %c0_i32_0 : i32, i32, i32
  }
  func.func @transform_1(%arg0: i32) -> (i32, i32, i32) {
    %c0_i32 = arith.constant 0 : i32
    %c0_i32_0 = arith.constant 0 : i32
    %c0_i32_1 = arith.constant 0 : i32
    return %arg0, %c0_i32, %c0_i32_0 : i32, i32, i32
  }
  func.func @transform_2(%arg0: i32) -> (i32, i32) {
    %c0_i32 = arith.constant 0 : i32
    %c0_i32_0 = arith.constant 0 : i32
    %c0_i32_1 = arith.constant 0 : i32
    return %c0_i32, %c0_i32_0 : i32, i32
  }
  func.func @transform_3(%arg0: i32) -> (i32, i32) {
    %c0_i32 = arith.constant 0 : i32
    %c0_i32_0 = arith.constant 0 : i32
    %c0_i32_1 = arith.constant 0 : i32
    return %c0_i32, %c0_i32_0 : i32, i32
  }
  func.func @transform_4(%arg0: i32) -> (i32, i32) {
    %c0_i32 = arith.constant 0 : i32
    %c0_i32_0 = arith.constant 0 : i32
    %c0_i32_1 = arith.constant 0 : i32
    return %c0_i32, %c0_i32_0 : i32, i32
  }
  func.func @transform_5(%arg0: i32) -> (i32, i32) {
    %c0_i32 = arith.constant 0 : i32
    %c0_i32_0 = arith.constant 0 : i32
    %c0_i32_1 = arith.constant 0 : i32
    return %c0_i32, %c0_i32_0 : i32, i32
  }
  func.func @transform_6(%arg0: i32) -> (i32, i32) {
    %c0_i32 = arith.constant 0 : i32
    %c0_i32_0 = arith.constant 0 : i32
    %c0_i32_1 = arith.constant 0 : i32
    return %c0_i32, %c0_i32_0 : i32, i32
  }
  func.func @transform_7(%arg0: i32) -> (i32, i32) {
    %c0_i32 = arith.constant 0 : i32
    %c0_i32_0 = arith.constant 0 : i32
    %c0_i32_1 = arith.constant 0 : i32
    return %c0_i32, %c0_i32_0 : i32, i32
  }
  func.func @transform_8(%arg0: i32) -> (i32, i32) {
    %c0_i32 = arith.constant 0 : i32
    %c0_i32_0 = arith.constant 0 : i32
    %c0_i32_1 = arith.constant 0 : i32
    return %c0_i32, %c0_i32_0 : i32, i32
  }
  func.func @transform_9(%arg0: i32) -> (i32, i32) {
    %c0_i32 = arith.constant 0 : i32
    %c0_i32_0 = arith.constant 0 : i32
    %c0_i32_1 = arith.constant 0 : i32
    return %c0_i32, %c0_i32_0 : i32, i32
  }
  func.func @transform_10(%arg0: i32) -> (i32, i32, i32, i32) {
    %c0_i32 = arith.constant 0 : i32
    %c0_i32_0 = arith.constant 0 : i32
    %c0_i32_1 = arith.constant 0 : i32
    %c0_i32_2 = arith.constant 0 : i32
    %c0_i32_3 = arith.constant 0 : i32
    return %c0_i32, %c0_i32_0, %c0_i32_1, %c0_i32_2 : i32, i32, i32, i32
  }
  func.func @transform_11(%arg0: i32) -> (i32, i32, i32, i32) {
    %c0_i32 = arith.constant 0 : i32
    %c0_i32_0 = arith.constant 0 : i32
    %c0_i32_1 = arith.constant 0 : i32
    %c0_i32_2 = arith.constant 0 : i32
    %c0_i32_3 = arith.constant 0 : i32
    return %c0_i32, %c0_i32_0, %c0_i32_1, %c0_i32_2 : i32, i32, i32, i32
  }
  func.func @transform_12(%arg0: i32) -> (i32, i32, i32) {
    %c0_i32 = arith.constant 0 : i32
    %c0_i32_0 = arith.constant 0 : i32
    %c0_i32_1 = arith.constant 0 : i32
    return %arg0, %c0_i32, %c0_i32_0 : i32, i32, i32
  }
}

</mosaic_0001>

<llo_original>
// kernel: ms_msa_forward.1
$region0: #{ms_msa_forward.1}
  #allocation0 [shape = 'u32[]', space=smem, size = 0x4, offset = 0x4, fixed_abs, tag = 'smem constant byte address 0x4 - core index']
  #allocation1 [shape = 'u32[72,128]{1,0:T(1,128)}', space=vmem, size = 0x9000, scoped, tag = 'internal scratch']
  %s0 = inlined_call_operand.vmem [shape: f32[2,16,64], index: 0, kind: input, shape index: {}]
  %s1 = inlined_call_operand.vmem [shape: f32[2,16,256], index: 1, kind: input, shape index: {}]
  %s2 = inlined_call_operand.vmem [shape: f32[32,16], index: 2, kind: input, shape index: {}]
  %s3 = inlined_call_operand.vmem [shape: f32[16,16], index: 3, kind: input, shape index: {}]
  %s4 = inlined_call_operand.vmem [shape: f32[16,16], index: 4, kind: input, shape index: {}]
  %s5 = inlined_call_operand.vmem [shape: f32[16,1], index: 5, kind: input, shape index: {}]
  %s6 = inlined_call_operand.vmem [shape: f32[16,16], index: 6, kind: input, shape index: {}]
  %s7 = inlined_call_operand.vmem [shape: f32[16,1], index: 7, kind: input, shape index: {}]
  %s8 = inlined_call_operand.vmem [shape: f32[16,1], index: 8, kind: input, shape index: {}]
  %s9 = inlined_call_operand.vmem [shape: f32[16,16], index: 9, kind: input, shape index: {}]
  %s10 = inlined_call_operand.vmem [shape: f32[3,3,16,1], index: 10, kind: input, shape index: {}]
  %s11 = inlined_call_operand.vmem [shape: f32[3,3,16,1], index: 11, kind: input, shape index: {}]
  %s12 = inlined_call_operand.vmem [shape: f32[2,16,256], index: 12, kind: output, shape index: {}]
  %s13 = sld [smem:[#allocation0]]
  $region81: #{ms_msa_forward.1} parent=0
    _
  %s15 = ssub.s32 1, %s13
  %s16 = scalar_select 0, %s15, %s13
  loop: start=0, step=1, limit=4
  $region2: #{ms_msa_forward.1} parent=0 // loop_pre_header
    _
  $region3: #{ms_msa_forward.1} parent=0 // loop_header
    %s18 = sphi 0, %s22
    %p19 = scmp.ge.s32.totalorder %s18, 4
    %s28 = sphi 0, %s30
    %s31 = sphi 0, %s28
    %s32 = sphi 0, %s31
    %s48 = sphi 0, %s32
    %s54 = sphi 0, %s56
    %s57 = sphi 0, %s54
    %s58 = sphi 0, %s57
    %s74 = sphi 0, %s58
    %s78 = sphi 0, %s78
    %s80 = sphi 0, %s78
    %s81 = sphi 0, %s80
    %s95 = sphi 0, %s81
    %s99 = sphi 0, %s99
    %s101 = sphi 0, %s99
    %s102 = sphi 0, %s101
    %s116 = sphi 0, %s102
    %s120 = sphi 0, %s120
    %s122 = sphi 0, %s120
    %s123 = sphi 0, %s122
    %s137 = sphi 0, %s123
    %s141 = sphi 0, %s141
    %s143 = sphi 0, %s141
    %s144 = sphi 0, %s143
    %s158 = sphi 0, %s144
    %s162 = sphi 0, %s162
    %s164 = sphi 0, %s162
    %s165 = sphi 0, %s164
    %s179 = sphi 0, %s165
    %s183 = sphi 0, %s183
    %s185 = sphi 0, %s183
    %s186 = sphi 0, %s185
    %s200 = sphi 0, %s186
    %s204 = sphi 0, %s204
    %s206 = sphi 0, %s204
    %s207 = sphi 0, %s206
    %s221 = sphi 0, %s207
    %s225 = sphi 0, %s225
    %s227 = sphi 0, %s225
    %s228 = sphi 0, %s227
    %s242 = sphi 0, %s228
    %s246 = sphi 0, %s246
    %s248 = sphi 0, %s246
    %s249 = sphi 0, %s248
    %s263 = sphi 0, %s249
    %s267 = sphi 0, %s267
    %s269 = sphi 0, %s267
    %s270 = sphi 0, %s269
    %s284 = sphi 0, %s270
    %s290 = sphi 0, %s292
    %s293 = sphi 0, %s290
    %s294 = sphi 0, %s293
    %s310 = sphi 0, %s294
  $region4: #{ms_msa_forward.1} parent=0 // loop_header_branch
    %21 = sbr.rel (%p19) target = $region8
  $region5: #{ms_msa_forward.1} parent=0 // loop_body
    %s23 = ssub.s32 %s18, 1
    %s24 = ssub.s32 %s18, 2
    %s25 = sadd.s32 %s18, 1
    %s26 = ssub.s32 %s18, %s25
    %p27 = scmp.eq.s32.totalorder %s26, 0
    %s29 = sadd.s32 %s28, 1
    %s30 = scalar_select %p27, %s28, %s29
    %p33 = pneg %p27
    %p34 = scmp.eq.s32.totalorder %s18, 1
    %p35 = por %p33, %p34
    %p36 = scmp.ne.s32.totalorder %s28, %s31
    %p37 = scmp.eq.s32.totalorder %s18, 0
    %p38 = por %p36, %p37
    %p39 = scmp.ne.s32.totalorder %s28, %s31
    %p40 = scmp.eq.s32.totalorder %s23, 1
    %p41 = por %p39, %p40
    %p42 = scmp.ne.s32.totalorder %s31, %s32
    %p43 = scmp.eq.s32.totalorder %s23, 0
    %p44 = por %p42, %p43
    %p45 = scmp.ne.s32.totalorder %s31, %s32
    %p46 = scmp.eq.s32.totalorder %s24, 1
    %p47 = por %p45, %p46
    %p49 = scmp.ne.s32.totalorder %s32, %s48
    %p50 = scmp.eq.s32.totalorder %s24, 0
    %p51 = por %p49, %p50
    %s52 = ssub.s32 %s18, %s25
    %p53 = scmp.eq.s32.totalorder %s52, 0
    %s55 = sadd.s32 %s54, 1
    %s56 = scalar_select %p53, %s54, %s55
    %p59 = pneg %p53
    %p60 = scmp.eq.s32.totalorder %s18, 1
    %p61 = por %p59, %p60
    %p62 = scmp.ne.s32.totalorder %s54, %s57
    %p63 = scmp.eq.s32.totalorder %s18, 0
    %p64 = por %p62, %p63
    %p65 = scmp.ne.s32.totalorder %s54, %s57
    %p66 = scmp.eq.s32.totalorder %s23, 1
    %p67 = por %p65, %p66
    %p68 = scmp.ne.s32.totalorder %s57, %s58
    %p69 = scmp.eq.s32.totalorder %s23, 0
    %p70 = por %p68, %p69
    %p71 = scmp.ne.s32.totalorder %s57, %s58
    %p72 = scmp.eq.s32.totalorder %s24, 1
    %p73 = por %p71, %p72
    %p75 = scmp.ne.s32.totalorder %s58, %s74
    %p76 = scmp.eq.s32.totalorder %s24, 0
    %p77 = por %p75, %p76
    %s79 = sadd.s32 %s78, 1
    %p82 = scmp.eq.s32.totalorder %s18, 1
    %p83 = scmp.ne.s32.totalorder %s78, %s80
    %p84 = scmp.eq.s32.totalorder %s18, 0
    %p85 = por %p83, %p84
    %p86 = scmp.ne.s32.totalorder %s78, %s80
    %p87 = scmp.eq.s32.totalorder %s23, 1
    %p88 = por %p86, %p87
    %p89 = scmp.ne.s32.totalorder %s80, %s81
    %p90 = scmp.eq.s32.totalorder %s23, 0
    %p91 = por %p89, %p90
    %p92 = scmp.ne.s32.totalorder %s80, %s81
    %p93 = scmp.eq.s32.totalorder %s24, 1
    %p94 = por %p92, %p93
    %p96 = scmp.ne.s32.totalorder %s81, %s95
    %p97 = scmp.eq.s32.totalorder %s24, 0
    %p98 = por %p96, %p97
    %s100 = sadd.s32 %s99, 1
    %p103 = scmp.eq.s32.totalorder %s18, 1
    %p104 = scmp.ne.s32.totalorder %s99, %s101
    %p105 = scmp.eq.s32.totalorder %s18, 0
    %p106 = por %p104, %p105
    %p107 = scmp.ne.s32.totalorder %s99, %s101
    %p108 = scmp.eq.s32.totalorder %s23, 1
    %p109 = por %p107, %p108
    %p110 = scmp.ne.s32.totalorder %s101, %s102
    %p111 = scmp.eq.s32.totalorder %s23, 0
    %p112 = por %p110, %p111
    %p113 = scmp.ne.s32.totalorder %s101, %s102
    %p114 = scmp.eq.s32.totalorder %s24, 1
    %p115 = por %p113, %p114
    %p117 = scmp.ne.s32.totalorder %s102, %s116
    %p118 = scmp.eq.s32.totalorder %s24, 0
    %p119 = por %p117, %p118
    %s121 = sadd.s32 %s120, 1
    %p124 = scmp.eq.s32.totalorder %s18, 1
    %p125 = scmp.ne.s32.totalorder %s120, %s122
    %p126 = scmp.eq.s32.totalorder %s18, 0
    %p127 = por %p125, %p126
    %p128 = scmp.ne.s32.totalorder %s120, %s122
    %p129 = scmp.eq.s32.totalorder %s23, 1
    %p130 = por %p128, %p129
    %p131 = scmp.ne.s32.totalorder %s122, %s123
    %p132 = scmp.eq.s32.totalorder %s23, 0
    %p133 = por %p131, %p132
    %p134 = scmp.ne.s32.totalorder %s122, %s123
    %p135 = scmp.eq.s32.totalorder %s24, 1
    %p136 = por %p134, %p135
    %p138 = scmp.ne.s32.totalorder %s123, %s137
    %p139 = scmp.eq.s32.totalorder %s24, 0
    %p140 = por %p138, %p139
    %s142 = sadd.s32 %s141, 1
    %p145 = scmp.eq.s32.totalorder %s18, 1
    %p146 = scmp.ne.s32.totalorder %s141, %s143
    %p147 = scmp.eq.s32.totalorder %s18, 0
    %p148 = por %p146, %p147
    %p149 = scmp.ne.s32.totalorder %s141, %s143
    %p150 = scmp.eq.s32.totalorder %s23, 1
    %p151 = por %p149, %p150
    %p152 = scmp.ne.s32.totalorder %s143, %s144
    %p153 = scmp.eq.s32.totalorder %s23, 0
    %p154 = por %p152, %p153
    %p155 = scmp.ne.s32.totalorder %s143, %s144
    %p156 = scmp.eq.s32.totalorder %s24, 1
    %p157 = por %p155, %p156
    %p159 = scmp.ne.s32.totalorder %s144, %s158
    %p160 = scmp.eq.s32.totalorder %s24, 0
    %p161 = por %p159, %p160
    %s163 = sadd.s32 %s162, 1
    %p166 = scmp.eq.s32.totalorder %s18, 1
    %p167 = scmp.ne.s32.totalorder %s162, %s164
    %p168 = scmp.eq.s32.totalorder %s18, 0
    %p169 = por %p167, %p168
    %p170 = scmp.ne.s32.totalorder %s162, %s164
    %p171 = scmp.eq.s32.totalorder %s23, 1
    %p172 = por %p170, %p171
    %p173 = scmp.ne.s32.totalorder %s164, %s165
    %p174 = scmp.eq.s32.totalorder %s23, 0
    %p175 = por %p173, %p174
    %p176 = scmp.ne.s32.totalorder %s164, %s165
    %p177 = scmp.eq.s32.totalorder %s24, 1
    %p178 = por %p176, %p177
    %p180 = scmp.ne.s32.totalorder %s165, %s179
    %p181 = scmp.eq.s32.totalorder %s24, 0
    %p182 = por %p180, %p181
    %s184 = sadd.s32 %s183, 1
    %p187 = scmp.eq.s32.totalorder %s18, 1
    %p188 = scmp.ne.s32.totalorder %s183, %s185
    %p189 = scmp.eq.s32.totalorder %s18, 0
    %p190 = por %p188, %p189
    %p191 = scmp.ne.s32.totalorder %s183, %s185
    %p192 = scmp.eq.s32.totalorder %s23, 1
    %p193 = por %p191, %p192
    %p194 = scmp.ne.s32.totalorder %s185, %s186
    %p195 = scmp.eq.s32.totalorder %s23, 0
    %p196 = por %p194, %p195
    %p197 = scmp.ne.s32.totalorder %s185, %s186
    %p198 = scmp.eq.s32.totalorder %s24, 1
    %p199 = por %p197, %p198
    %p201 = scmp.ne.s32.totalorder %s186, %s200
    %p202 = scmp.eq.s32.totalorder %s24, 0
    %p203 = por %p201, %p202
    %s205 = sadd.s32 %s204, 1
    %p208 = scmp.eq.s32.totalorder %s18, 1
    %p209 = scmp.ne.s32.totalorder %s204, %s206
    %p210 = scmp.eq.s32.totalorder %s18, 0
    %p211 = por %p209, %p210
    %p212 = scmp.ne.s32.totalorder %s204, %s206
    %p213 = scmp.eq.s32.totalorder %s23, 1
    %p214 = por %p212, %p213
    %p215 = scmp.ne.s32.totalorder %s206, %s207
    %p216 = scmp.eq.s32.totalorder %s23, 0
    %p217 = por %p215, %p216
    %p218 = scmp.ne.s32.totalorder %s206, %s207
    %p219 = scmp.eq.s32.totalorder %s24, 1
    %p220 = por %p218, %p219
    %p222 = scmp.ne.s32.totalorder %s207, %s221
    %p223 = scmp.eq.s32.totalorder %s24, 0
    %p224 = por %p222, %p223
    %s226 = sadd.s32 %s225, 1
    %p229 = scmp.eq.s32.totalorder %s18, 1
    %p230 = scmp.ne.s32.totalorder %s225, %s227
    %p231 = scmp.eq.s32.totalorder %s18, 0
    %p232 = por %p230, %p231
    %p233 = scmp.ne.s32.totalorder %s225, %s227
    %p234 = scmp.eq.s32.totalorder %s23, 1
    %p235 = por %p233, %p234
    %p236 = scmp.ne.s32.totalorder %s227, %s228
    %p237 = scmp.eq.s32.totalorder %s23, 0
    %p238 = por %p236, %p237
    %p239 = scmp.ne.s32.totalorder %s227, %s228
    %p240 = scmp.eq.s32.totalorder %s24, 1
    %p241 = por %p239, %p240
    %p243 = scmp.ne.s32.totalorder %s228, %s242
    %p244 = scmp.eq.s32.totalorder %s24, 0
    %p245 = por %p243, %p244
    %s247 = sadd.s32 %s246, 1
    %p250 = scmp.eq.s32.totalorder %s18, 1
    %p251 = scmp.ne.s32.totalorder %s246, %s248
    %p252 = scmp.eq.s32.totalorder %s18, 0
    %p253 = por %p251, %p252
    %p254 = scmp.ne.s32.totalorder %s246, %s248
    %p255 = scmp.eq.s32.totalorder %s23, 1
    %p256 = por %p254, %p255
    %p257 = scmp.ne.s32.totalorder %s248, %s249
    %p258 = scmp.eq.s32.totalorder %s23, 0
    %p259 = por %p257, %p258
    %p260 = scmp.ne.s32.totalorder %s248, %s249
    %p261 = scmp.eq.s32.totalorder %s24, 1
    %p262 = por %p260, %p261
    %p264 = scmp.ne.s32.totalorder %s249, %s263
    %p265 = scmp.eq.s32.totalorder %s24, 0
    %p266 = por %p264, %p265
    %s268 = sadd.s32 %s267, 1
    %p271 = scmp.eq.s32.totalorder %s18, 1
    %p272 = scmp.ne.s32.totalorder %s267, %s269
    %p273 = scmp.eq.s32.totalorder %s18, 0
    %p274 = por %p272, %p273
    %p275 = scmp.ne.s32.totalorder %s267, %s269
    %p276 = scmp.eq.s32.totalorder %s23, 1
    %p277 = por %p275, %p276
    %p278 = scmp.ne.s32.totalorder %s269, %s270
    %p279 = scmp.eq.s32.totalorder %s23, 0
    %p280 = por %p278, %p279
    %p281 = scmp.ne.s32.totalorder %s269, %s270
    %p282 = scmp.eq.s32.totalorder %s24, 1
    %p283 = por %p281, %p282
    %p285 = scmp.ne.s32.totalorder %s270, %s284
    %p286 = scmp.eq.s32.totalorder %s24, 0
    %p287 = por %p285, %p286
    %s288 = ssub.s32 %s18, %s25
    %p289 = scmp.eq.s32.totalorder %s288, 0
    %s291 = sadd.s32 %s290, 1
    %s292 = scalar_select %p289, %s290, %s291
    %p295 = pneg %p289
    %p296 = scmp.eq.s32.totalorder %s18, 1
    %p297 = por %p295, %p296
    %p298 = scmp.ne.s32.totalorder %s290, %s293
    %p299 = scmp.eq.s32.totalorder %s18, 0
    %p300 = por %p298, %p299
    %p301 = scmp.ne.s32.totalorder %s290, %s293
    %p302 = scmp.eq.s32.totalorder %s23, 1
    %p303 = por %p301, %p302
    %p304 = scmp.ne.s32.totalorder %s293, %s294
    %p305 = scmp.eq.s32.totalorder %s23, 0
    %p306 = por %p304, %p305
    %p307 = scmp.ne.s32.totalorder %s293, %s294
    %p308 = scmp.eq.s32.totalorder %s24, 1
    %p309 = por %p307, %p308
    %p311 = scmp.ne.s32.totalorder %s294, %s310
    %p312 = scmp.eq.s32.totalorder %s24, 0
    %p313 = por %p311, %p312
    %p314 = scmp.le.s32.totalorder 1, %s18
    %p315 = scmp.lt.s32.totalorder %s18, 3
    %p316 = pnand %p314, %p315
    %p317 = pneg %p316
    // Predicated region
    $region9: #{ms_msa_forward.1} parent=5 // pred_check
      _
    $region10: #{ms_msa_forward.1} parent=5 // pred_check_branch
      %319 = sbr.rel (%p316) target = $region12
    $region11: #{ms_msa_forward.1} parent=5 // pred_region
      %s320 = ssub.s32 %s18, 1
      // Predicated region
      $region13: #{ms_msa_forward.1} parent=11 // pred_check
        %p321 = pneg %p91
      $region14: #{ms_msa_forward.1} parent=11 // pred_check_branch
        %323 = sbr.rel (%p321) target = $region16
      $region15: #{ms_msa_forward.1} parent=11 // pred_region
        _
      $region16: #{ms_msa_forward.1} parent=11 // pred_fallthru
        _
      // Predicated region
      $region17: #{ms_msa_forward.1} parent=11 // pred_check
        %p324 = pneg %p112
      $region18: #{ms_msa_forward.1} parent=11 // pred_check_branch
        %326 = sbr.rel (%p324) target = $region20
      $region19: #{ms_msa_forward.1} parent=11 // pred_region
        _
      $region20: #{ms_msa_forward.1} parent=11 // pred_fallthru
        _
      // Predicated region
      $region21: #{ms_msa_forward.1} parent=11 // pred_check
        %p327 = pneg %p133
      $region22: #{ms_msa_forward.1} parent=11 // pred_check_branch
        %329 = sbr.rel (%p327) target = $region24
      $region23: #{ms_msa_forward.1} parent=11 // pred_region
        _
      $region24: #{ms_msa_forward.1} parent=11 // pred_fallthru
        _
      // Predicated region
      $region25: #{ms_msa_forward.1} parent=11 // pred_check
        %p330 = pneg %p154
      $region26: #{ms_msa_forward.1} parent=11 // pred_check_branch
        %332 = sbr.rel (%p330) target = $region28
      $region27: #{ms_msa_forward.1} parent=11 // pred_region
        _
      $region28: #{ms_msa_forward.1} parent=11 // pred_fallthru
        _
      // Predicated region
      $region29: #{ms_msa_forward.1} parent=11 // pred_check
        %p333 = pneg %p175
      $region30: #{ms_msa_forward.1} parent=11 // pred_check_branch
        %335 = sbr.rel (%p333) target = $region32
      $region31: #{ms_msa_forward.1} parent=11 // pred_region
        _
      $region32: #{ms_msa_forward.1} parent=11 // pred_fallthru
        _
      // Predicated region
      $region33: #{ms_msa_forward.1} parent=11 // pred_check
        %p336 = pneg %p196
      $region34: #{ms_msa_forward.1} parent=11 // pred_check_branch
        %338 = sbr.rel (%p336) target = $region36
      $region35: #{ms_msa_forward.1} parent=11 // pred_region
        _
      $region36: #{ms_msa_forward.1} parent=11 // pred_fallthru
        _
      // Predicated region
      $region37: #{ms_msa_forward.1} parent=11 // pred_check
        %p339 = pneg %p217
      $region38: #{ms_msa_forward.1} parent=11 // pred_check_branch
        %341 = sbr.rel (%p339) target = $region40
      $region39: #{ms_msa_forward.1} parent=11 // pred_region
        _
      $region40: #{ms_msa_forward.1} parent=11 // pred_fallthru
        _
      // Predicated region
      $region41: #{ms_msa_forward.1} parent=11 // pred_check
        %p342 = pneg %p238
      $region42: #{ms_msa_forward.1} parent=11 // pred_check_branch
        %344 = sbr.rel (%p342) target = $region44
      $region43: #{ms_msa_forward.1} parent=11 // pred_region
        _
      $region44: #{ms_msa_forward.1} parent=11 // pred_fallthru
        _
      // Predicated region
      $region45: #{ms_msa_forward.1} parent=11 // pred_check
        %p345 = pneg %p259
      $region46: #{ms_msa_forward.1} parent=11 // pred_check_branch
        %347 = sbr.rel (%p345) target = $region48
      $region47: #{ms_msa_forward.1} parent=11 // pred_region
        _
      $region48: #{ms_msa_forward.1} parent=11 // pred_fallthru
        _
      // Predicated region
      $region49: #{ms_msa_forward.1} parent=11 // pred_check
        %p348 = pneg %p280
      $region50: #{ms_msa_forward.1} parent=11 // pred_check_branch
        %350 = sbr.rel (%p348) target = $region52
      $region51: #{ms_msa_forward.1} parent=11 // pred_region
        _
      $region52: #{ms_msa_forward.1} parent=11 // pred_fallthru
        _
    $region12: #{ms_msa_forward.1} parent=5 // pred_fallthru
      _
    %p351 = scmp.lt.s32.totalorder %s18, 2
    // Predicated region
    $region53: #{ms_msa_forward.1} parent=5 // pred_check
      %p352 = pneg %p351
    $region54: #{ms_msa_forward.1} parent=5 // pred_check_branch
      %354 = sbr.rel (%p352) target = $region56
    $region55: #{ms_msa_forward.1} parent=5 // pred_region
      // Predicated region
      $region57: #{ms_msa_forward.1} parent=55 // pred_check
        %p355 = pneg %p38
      $region58: #{ms_msa_forward.1} parent=55 // pred_check_branch
        %357 = sbr.rel (%p355) target = $region60
      $region59: #{ms_msa_forward.1} parent=55 // pred_region
        %p358 = scmp.lt.s32.totalorder %s18, 1
        %s359 = scalar_select %p358, %s18, 1
        %s360 = smul.addr %s359, 2
        %s361 = smul.addr %s360, 8
        %s362 = scalar_lea.vmem %s0, %s361
      $region60: #{ms_msa_forward.1} parent=55 // pred_fallthru
        _
      // Predicated region
      $region61: #{ms_msa_forward.1} parent=55 // pred_check
        %p363 = pneg %p64
      $region62: #{ms_msa_forward.1} parent=55 // pred_check_branch
        %365 = sbr.rel (%p363) target = $region64
      $region63: #{ms_msa_forward.1} parent=55 // pred_region
        %p366 = scmp.lt.s32.totalorder %s18, 1
        %s367 = scalar_select %p366, %s18, 1
        %s368 = smul.addr %s367, 4
        %s369 = smul.addr %s368, 8
        %s370 = scalar_lea.vmem %s1, %s369
      $region64: #{ms_msa_forward.1} parent=55 // pred_fallthru
        _
    $region56: #{ms_msa_forward.1} parent=5 // pred_fallthru
      _
    %p371 = scmp.le.s32.totalorder 1, %s18
    %p372 = scmp.lt.s32.totalorder %s18, 3
    %p373 = pnand %p371, %p372
    %p374 = pneg %p373
    // Predicated region
    $region65: #{ms_msa_forward.1} parent=5 // pred_check
      _
    $region66: #{ms_msa_forward.1} parent=5 // pred_check_branch
      %376 = sbr.rel (%p373) target = $region68
    $region67: #{ms_msa_forward.1} parent=5 // pred_region
      %s377 = ssub.s32 %s18, 1
      %p378 = scmp.lt.s32.totalorder %s23, 1
      %s379 = scalar_select %p378, %s23, 1
      %s380 = smul.addr %s379, 2
      %s381 = smul.addr %s380, 8
      %s382 = scalar_lea.vmem %s0, %s381
      %p383 = pneg %p44
      %p384 = pneg %p41
      %p385 = scmp.lt.s32.totalorder %s23, 1
      %s386 = scalar_select %p385, %s23, 1
      %s387 = smul.addr %s386, 4
      %s388 = smul.addr %s387, 8
      %s389 = scalar_lea.vmem %s1, %s388
      %p390 = pneg %p70
      %p391 = pneg %p67
      %p392 = pneg %p91
      %p393 = pneg %p88
      %p394 = pneg %p112
      %p395 = pneg %p109
      %p396 = pneg %p133
      %p397 = pneg %p130
      %p398 = pneg %p154
      %p399 = pneg %p151
      %p400 = pneg %p175
      %p401 = pneg %p172
      %p402 = pneg %p196
      %p403 = pneg %p193
      %p404 = pneg %p217
      %p405 = pneg %p214
      %p406 = pneg %p238
      %p407 = pneg %p235
      %p408 = pneg %p259
      %p409 = pneg %p256
      %p410 = pneg %p280
      %p411 = pneg %p277
      %p412 = pneg %p306
      %p413 = pneg %p303
      %p414 = scmp.lt.s32.totalorder %s23, 1
      %s415 = scalar_select %p414, %s23, 1
      %s416 = smul.addr %s415, 4
      %s417 = smul.addr %s416, 8
      %s418 = scalar_lea.vmem %s12, %s417
      %p419 = scmp.lt.s32.totalorder %s23, 1
      %s420 = scalar_select %p419, %s23, 1
      %s421 = smul.addr %s420, 2
      %s422 = smul.addr %s421, 8
      %s423 = scalar_lea.vmem %s0, %s422
      %p424 = scmp.lt.s32.totalorder %s23, 1
      %s425 = scalar_select %p424, %s23, 1
      %s426 = smul.addr %s425, 4
      %s427 = smul.addr %s426, 8
      %s428 = scalar_lea.vmem %s1, %s427
      %p429 = scmp.lt.s32.totalorder %s23, 1
      %s430 = scalar_select %p429, %s23, 1
      %s431 = smul.addr %s430, 4
      %s432 = smul.addr %s431, 8
      %s433 = scalar_lea.vmem %s12, %s432
      %v434 = vld [vmem:[%s423] sm:$0xff]
      %v435 = vld [vmem:[%s423 + $0x8] sm:$0xff]
      %v436 = vld [vmem:[%s428] sm:$0xff]
      %v437 = vld [vmem:[%s428 + $0x8] sm:$0xff]
      %v438 = vld [vmem:[%s428 + $0x10] sm:$0xff]
      %v439 = vld [vmem:[%s428 + $0x18] sm:$0xff]
      %v440 = vld [vmem:[%s2] sm:$0xff]
      %v441 = vld [vmem:[%s2 + $0x8] sm:$0xff]
      %v442 = vld [vmem:[%s2 + $0x10] sm:$0xff]
      %v443 = vld [vmem:[%s2 + $0x18] sm:$0xff]
      %vm444 = vcmask 130048
      %v446 = vsel %vm444, %v440, 0
      %v449 = vsel %vm444, %v441, 0
      %v452 = vsel %vm444, %v442, 0
      %v455 = vsel %vm444, %v443, 0
      %457 = vmatpush.msra.mxu0 0.0
      %458 = vmatpush.msra.mxu0 0.0
      %459 = vmatpush.msra.mxu0 0.0
      %460 = vmatpush.msra.mxu0 0.0
      %461 = vmatpush.msra.mxu0 0.0
      %462 = vmatpush.msra.mxu0 0.0
      %463 = vmatpush.msra.mxu0 0.0
      %464 = vmatpush.msra.mxu0 0.0
      %465 = vmatpush.msra.mxu0 0.0
      %466 = vmatpush.msra.mxu0 0.0
      %467 = vmatpush.msra.mxu0 0.0
      %468 = vmatpush.msra.mxu0 0.0
      %469 = vmatpush.msra.mxu0 0.0
      %470 = vmatpush.msra.mxu0 0.0
      %471 = vmatpush.msra.mxu0 %v435
      %472 = vmatpush.msra.mxu0 %v434
      %473 = vmatmul.f32.gmra.mxu0 %v446
      %v474 = vpop.f32.mrf.mxu0
      %v475 = vadd.f32 0.0, %v474
      %476 = vmatmul.f32.gmra.mxu0 %v449
      %v477 = vpop.f32.mrf.mxu0
      %v478 = vadd.f32 0.0, %v477
      %479 = vmatmul.f32.gmra.mxu0 %v452
      %v480 = vpop.f32.mrf.mxu0
      %v481 = vadd.f32 0.0, %v480
      %482 = vmatmul.f32.gmra.mxu0 %v455
      %v483 = vpop.f32.mrf.mxu0
      %v484 = vadd.f32 0.0, %v483
      %485 = vdwg.mxu0
      %v486 = vld [vmem:[%s3] sm:$0xff]
      %v487 = vld [vmem:[%s3 + $0x8] sm:$0xff]
      %v489 = vsel %vm444, %v486, 0
      %v492 = vsel %vm444, %v487, 0
      %494 = vmatpush.msra.mxu0 0.0
      %495 = vmatpush.msra.mxu0 0.0
      %496 = vmatpush.msra.mxu0 0.0
      %497 = vmatpush.msra.mxu0 0.0
      %498 = vmatpush.msra.mxu0 0.0
      %499 = vmatpush.msra.mxu0 0.0
      %500 = vmatpush.msra.mxu0 0.0
      %501 = vmatpush.msra.mxu0 0.0
      %502 = vmatpush.msra.mxu0 0.0
      %503 = vmatpush.msra.mxu0 0.0
      %504 = vmatpush.msra.mxu0 0.0
      %505 = vmatpush.msra.mxu0 0.0
      %506 = vmatpush.msra.mxu0 0.0
      %507 = vmatpush.msra.mxu0 0.0
      %508 = vmatpush.msra.mxu0 %v438
      %509 = vmatpush.msra.mxu0 %v436
      %510 = vmatmul.f32.gmra.mxu0 %v489
      %v511 = vpop.f32.mrf.mxu0
      %v512 = vadd.f32 0.0, %v511
      %513 = vmatmul.f32.gmra.mxu0 %v492
      %v514 = vpop.f32.mrf.mxu0
      %v515 = vadd.f32 0.0, %v514
      %516 = vdwg.mxu0
      %517 = vmatpush.msra.mxu0 0.0
      %518 = vmatpush.msra.mxu0 0.0
      %519 = vmatpush.msra.mxu0 0.0
      %520 = vmatpush.msra.mxu0 0.0
      %521 = vmatpush.msra.mxu0 0.0
      %522 = vmatpush.msra.mxu0 0.0
      %523 = vmatpush.msra.mxu0 0.0
      %524 = vmatpush.msra.mxu0 0.0
      %525 = vmatpush.msra.mxu0 0.0
      %526 = vmatpush.msra.mxu0 0.0
      %527 = vmatpush.msra.mxu0 0.0
      %528 = vmatpush.msra.mxu0 0.0
      %529 = vmatpush.msra.mxu0 0.0
      %530 = vmatpush.msra.mxu0 0.0
      %531 = vmatpush.msra.mxu0 %v439
      %532 = vmatpush.msra.mxu0 %v437
      %533 = vmatmul.f32.gmra.mxu0 %v489
      %v534 = vpop.f32.mrf.mxu0
      %v535 = vadd.f32 0.0, %v534
      %536 = vmatmul.f32.gmra.mxu0 %v492
      %v537 = vpop.f32.mrf.mxu0
      %v538 = vadd.f32 0.0, %v537
      %539 = vdwg.mxu0
      %v540 = vmul.f32 %v475, %v475
      %v541 = vmul.f32 %v478, %v478
      %v542 = vmul.f32 %v481, %v481
      %v543 = vmul.f32 %v484, %v484
      %vm544 = vcmask 523264
      %v545 = vsel %vm544, %v540, 0.0
      %546 = vadd.xlane.f32.xlu0 %v545
      %v547 = vpop.xlane.xlu0 %546
      %v548 = vsel %vm544, %v541, 0.0
      %549 = vadd.xlane.f32.xlu0 %v548
      %v550 = vpop.xlane.xlu0 %549
      %v551 = vsel %vm544, %v542, 0.0
      %552 = vadd.xlane.f32.xlu0 %v551
      %v553 = vpop.xlane.xlu0 %552
      %v554 = vsel %vm544, %v543, 0.0
      %555 = vadd.xlane.f32.xlu0 %v554
      %v556 = vpop.xlane.xlu0 %555
      %v557 = vrsqrt.pop %v547
      %v558 = vmul.f32 %v557, %v547
      %v559 = vmul.f32 %v558, %v557
      %v560 = vmul.f32 0.5, %v559
      %v561 = vsub.f32 1.5, %v560
      %v562 = vmul.f32 %v557, %v561
      %v563 = vmul.f32 %v547, %v562
      %vm564 = vcmp.eq.f32.partialorder %v547, inf
      %v565 = vsel %vm564, %v547, %v563
      %vm566 = vcmp.eq.f32.partialorder %v547, 0.0
      %v567 = vand.u32 %v547, 2147483648
      %v568 = vsel %vm566, %v567, %v565
      %v569 = vrsqrt.pop %v550
      %v570 = vmul.f32 %v569, %v550
      %v571 = vmul.f32 %v570, %v569
      %v572 = vmul.f32 0.5, %v571
      %v573 = vsub.f32 1.5, %v572
      %v574 = vmul.f32 %v569, %v573
      %v575 = vmul.f32 %v550, %v574
      %vm576 = vcmp.eq.f32.partialorder %v550, inf
      %v577 = vsel %vm576, %v550, %v575
      %vm578 = vcmp.eq.f32.partialorder %v550, 0.0
      %v579 = vand.u32 %v550, 2147483648
      %v580 = vsel %vm578, %v579, %v577
      %v581 = vrsqrt.pop %v553
      %v582 = vmul.f32 %v581, %v553
      %v583 = vmul.f32 %v582, %v581
      %v584 = vmul.f32 0.5, %v583
      %v585 = vsub.f32 1.5, %v584
      %v586 = vmul.f32 %v581, %v585
      %v587 = vmul.f32 %v553, %v586
      %vm588 = vcmp.eq.f32.partialorder %v553, inf
      %v589 = vsel %vm588, %v553, %v587
      %vm590 = vcmp.eq.f32.partialorder %v553, 0.0
      %v591 = vand.u32 %v553, 2147483648
      %v592 = vsel %vm590, %v591, %v589
      %v593 = vrsqrt.pop %v556
      %v594 = vmul.f32 %v593, %v556
      %v595 = vmul.f32 %v594, %v593
      %v596 = vmul.f32 0.5, %v595
      %v597 = vsub.f32 1.5, %v596
      %v598 = vmul.f32 %v593, %v597
      %v599 = vmul.f32 %v556, %v598
      %vm600 = vcmp.eq.f32.partialorder %v556, inf
      %v601 = vsel %vm600, %v556, %v599
      %vm602 = vcmp.eq.f32.partialorder %v556, 0.0
      %v603 = vand.u32 %v556, 2147483648
      %v604 = vsel %vm602, %v603, %v601
      %v605 = vmax.f32 %v568, 1e-12
      %v606 = vmax.f32 %v580, 1e-12
      %v607 = vmax.f32 %v592, 1e-12
      %v608 = vmax.f32 %v604, 1e-12
      %v609 = vrcp.pop %v605
      %v610 = vmul.f32 %v605, %v609
      %v611 = vsub.f32 1.0, %v610
      %v612 = vmul.f32 %v609, %v611
      %v613 = vadd.f32 %v609, %v612
      %vm614 = vweird.f32 %v605
      %vm615 = vweird.f32 %v609
      %vm616 = vmor %vm614, %vm615
      %v617 = vsel %vm616, %v609, %v613
      %v618 = vand.u32 2147483647, %v605
      %vm619 = vcmp.eq.f32.partialorder %v618, 8.507059e+37
      %v620 = vand.u32 %v605, 2147483648
      %v621 = vor.u32 1.1754944e-38, %v620
      %v622 = vsel %vm619, %v621, %v617
      %v623 = vmul.f32 1.0, %v622
      %v624 = vrcp.pop %v606
      %v625 = vmul.f32 %v606, %v624
      %v626 = vsub.f32 1.0, %v625
      %v627 = vmul.f32 %v624, %v626
      %v628 = vadd.f32 %v624, %v627
      %vm629 = vweird.f32 %v606
      %vm630 = vweird.f32 %v624
      %vm631 = vmor %vm629, %vm630
      %v632 = vsel %vm631, %v624, %v628
      %v633 = vand.u32 2147483647, %v606
      %vm634 = vcmp.eq.f32.partialorder %v633, 8.507059e+37
      %v635 = vand.u32 %v606, 2147483648
      %v636 = vor.u32 1.1754944e-38, %v635
      %v637 = vsel %vm634, %v636, %v632
      %v638 = vmul.f32 1.0, %v637
      %v639 = vrcp.pop %v607
      %v640 = vmul.f32 %v607, %v639
      %v641 = vsub.f32 1.0, %v640
      %v642 = vmul.f32 %v639, %v641
      %v643 = vadd.f32 %v639, %v642
      %vm644 = vweird.f32 %v607
      %vm645 = vweird.f32 %v639
      %vm646 = vmor %vm644, %vm645
      %v647 = vsel %vm646, %v639, %v643
      %v648 = vand.u32 2147483647, %v607
      %vm649 = vcmp.eq.f32.partialorder %v648, 8.507059e+37
      %v650 = vand.u32 %v607, 2147483648
      %v651 = vor.u32 1.1754944e-38, %v650
      %v652 = vsel %vm649, %v651, %v647
      %v653 = vmul.f32 1.0, %v652
      %v654 = vrcp.pop %v608
      %v655 = vmul.f32 %v608, %v654
      %v656 = vsub.f32 1.0, %v655
      %v657 = vmul.f32 %v654, %v656
      %v658 = vadd.f32 %v654, %v657
      %vm659 = vweird.f32 %v608
      %vm660 = vweird.f32 %v654
      %vm661 = vmor %vm659, %vm660
      %v662 = vsel %vm661, %v654, %v658
      %v663 = vand.u32 2147483647, %v608
      %vm664 = vcmp.eq.f32.partialorder %v663, 8.507059e+37
      %v665 = vand.u32 %v608, 2147483648
      %v666 = vor.u32 1.1754944e-38, %v665
      %v667 = vsel %vm664, %v666, %v662
      %v668 = vmul.f32 1.0, %v667
      %v669 = vmul.f32 %v475, %v623
      %v670 = vmul.f32 %v478, %v638
      %v671 = vmul.f32 %v481, %v653
      %v672 = vmul.f32 %v484, %v668
      %v674 = vsel %vm544, %v671, 0
      %v677 = vsel %vm544, %v672, 0
      %v680 = vsel %vm544, %v669, 0
      %v683 = vsel %vm544, %v670, 0
      %685 = vmatpush.xpose.msra.mxu0 0.0
      %686 = vmatpush.xpose.msra.mxu0 0.0
      %687 = vmatpush.xpose.msra.mxu0 0.0
      %688 = vmatpush.xpose.msra.mxu0 0.0
      %689 = vmatpush.xpose.msra.mxu0 0.0
      %690 = vmatpush.xpose.msra.mxu0 0.0
      %691 = vmatpush.xpose.msra.mxu0 0.0
      %692 = vmatpush.xpose.msra.mxu0 0.0
      %693 = vmatpush.xpose.msra.mxu0 0.0
      %694 = vmatpush.xpose.msra.mxu0 0.0
      %695 = vmatpush.xpose.msra.mxu0 0.0
      %696 = vmatpush.xpose.msra.mxu0 0.0
      %697 = vmatpush.xpose.msra.mxu0 0.0
      %698 = vmatpush.xpose.msra.mxu0 0.0
      %699 = vmatpush.xpose.msra.mxu0 %v683
      %700 = vmatpush.xpose.msra.mxu0 %v680
      %701 = vmatmul.f32.gmra.mxu0 %v674
      %v702 = vpop.f32.mrf.mxu0
      %v703 = vadd.f32 0.0, %v702
      %704 = vmatmul.f32.gmra.mxu0 %v677
      %v705 = vpop.f32.mrf.mxu0
      %v706 = vadd.f32 0.0, %v705
      %707 = vdwg.mxu0
      %v708 = vld [vmem:[%s8] sm:$0xff]
      %v709 = vld [vmem:[%s8 + $0x8] sm:$0xff]
      %711 = vset.pattern.permute.xlu0 0
      %712 = vperm.xlu0 %711, %v708
      %v713 = vpop.permute.xlu0 %712
      %716 = vset.pattern.permute.xlu0 0
      %717 = vperm.xlu0 %716, %v709
      %v718 = vpop.permute.xlu0 %717
      %v720 = vmul.f32 %v703, %v713
      %v721 = vmul.f32 %v706, %v718
      %v722 = vld [vmem:[%s9] sm:$0xff]
      %v723 = vld [vmem:[%s9 + $0x8] sm:$0xff]
      %v724 = vadd.f32 %v720, %v722
      %v725 = vadd.f32 %v721, %v723
      %v726 = vsel %vm444, %v724, -inf
      %727 = vmax.xlane.f32.xlu0 %v726
      %v728 = vpop.xlane.xlu0 %727
      %v729 = vsel %vm444, %v725, -inf
      %730 = vmax.xlane.f32.xlu0 %v729
      %v731 = vpop.xlane.xlu0 %730
      %v732 = vsub.f32 %v724, %v728
      %v733 = vsub.f32 %v725, %v731
      %v734 = vmul.f32 %v732, 1.442695
      %v735 = vpow.pop %v734
      %v736 = vmul.f32 %v733, 1.442695
      %v737 = vpow.pop %v736
      %v738 = vsel %vm444, %v735, 0.0
      %739 = vadd.xlane.f32.xlu0 %v738
      %v740 = vpop.xlane.xlu0 %739
      %v741 = vsel %vm444, %v737, 0.0
      %742 = vadd.xlane.f32.xlu0 %v741
      %v743 = vpop.xlane.xlu0 %742
      %v744 = vrcp.pop %v740
      %v745 = vmul.f32 %v740, %v744
      %v746 = vsub.f32 1.0, %v745
      %v747 = vmul.f32 %v744, %v746
      %v748 = vadd.f32 %v744, %v747
      %vm749 = vweird.f32 %v740
      %vm750 = vweird.f32 %v744
      %vm751 = vmor %vm749, %vm750
      %v752 = vsel %vm751, %v744, %v748
      %v753 = vand.u32 2147483647, %v740
      %vm754 = vcmp.eq.f32.partialorder %v753, 8.507059e+37
      %v755 = vand.u32 %v740, 2147483648
      %v756 = vor.u32 1.1754944e-38, %v755
      %v757 = vsel %vm754, %v756, %v752
      %v758 = vmul.f32 1.0, %v757
      %v759 = vrcp.pop %v743
      %v760 = vmul.f32 %v743, %v759
      %v761 = vsub.f32 1.0, %v760
      %v762 = vmul.f32 %v759, %v761
      %v763 = vadd.f32 %v759, %v762
      %vm764 = vweird.f32 %v743
      %vm765 = vweird.f32 %v759
      %vm766 = vmor %vm764, %vm765
      %v767 = vsel %vm766, %v759, %v763
      %v768 = vand.u32 2147483647, %v743
      %vm769 = vcmp.eq.f32.partialorder %v768, 8.507059e+37
      %v770 = vand.u32 %v743, 2147483648
      %v771 = vor.u32 1.1754944e-38, %v770
      %v772 = vsel %vm769, %v771, %v767
      %v773 = vmul.f32 1.0, %v772
      %v774 = vmul.f32 %v735, %v758
      %v775 = vmul.f32 %v737, %v773
      %v777 = vsel %vm444, %v774, 0
      %v780 = vsel %vm444, %v775, 0
      %782 = vmatpush.msra.mxu0 0.0
      %783 = vmatpush.msra.mxu0 0.0
      %784 = vmatpush.msra.mxu0 0.0
      %785 = vmatpush.msra.mxu0 0.0
      %786 = vmatpush.msra.mxu0 0.0
      %787 = vmatpush.msra.mxu0 0.0
      %788 = vmatpush.msra.mxu0 0.0
      %789 = vmatpush.msra.mxu0 0.0
      %790 = vmatpush.msra.mxu0 0.0
      %791 = vmatpush.msra.mxu0 0.0
      %792 = vmatpush.msra.mxu0 0.0
      %793 = vmatpush.msra.mxu0 0.0
      %794 = vmatpush.msra.mxu0 0.0
      %795 = vmatpush.msra.mxu0 0.0
      %796 = vmatpush.msra.mxu0 %v515
      %797 = vmatpush.msra.mxu0 %v512
      %798 = vmatmul.f32.gmra.mxu0 %v777
      %v799 = vpop.f32.mrf.mxu0
      %v800 = vadd.f32 0.0, %v799
      %801 = vmatmul.f32.gmra.mxu0 %v780
      %v802 = vpop.f32.mrf.mxu0
      %v803 = vadd.f32 0.0, %v802
      %804 = vdwg.mxu0
      %805 = vmatpush.msra.mxu0 0.0
      %806 = vmatpush.msra.mxu0 0.0
      %807 = vmatpush.msra.mxu0 0.0
      %808 = vmatpush.msra.mxu0 0.0
      %809 = vmatpush.msra.mxu0 0.0
      %810 = vmatpush.msra.mxu0 0.0
      %811 = vmatpush.msra.mxu0 0.0
      %812 = vmatpush.msra.mxu0 0.0
      %813 = vmatpush.msra.mxu0 0.0
      %814 = vmatpush.msra.mxu0 0.0
      %815 = vmatpush.msra.mxu0 0.0
      %816 = vmatpush.msra.mxu0 0.0
      %817 = vmatpush.msra.mxu0 0.0
      %818 = vmatpush.msra.mxu0 0.0
      %819 = vmatpush.msra.mxu0 %v538
      %820 = vmatpush.msra.mxu0 %v535
      %821 = vmatmul.f32.gmra.mxu0 %v777
      %v822 = vpop.f32.mrf.mxu0
      %v823 = vadd.f32 0.0, %v822
      %824 = vmatmul.f32.gmra.mxu0 %v780
      %v825 = vpop.f32.mrf.mxu0
      %v826 = vadd.f32 0.0, %v825
      %827 = vdwg.mxu0
      %v828 = vld [vmem:[%s4] sm:$0xff]
      %v829 = vld [vmem:[%s4 + $0x8] sm:$0xff]
      %v830 = vld [vmem:[%s5] sm:$0xff]
      %v831 = vld [vmem:[%s5 + $0x8] sm:$0xff]
      %833 = vset.pattern.permute.xlu0 0
      %834 = vperm.xlu0 %833, %v830
      %v835 = vpop.permute.xlu0 %834
      %838 = vset.pattern.permute.xlu0 0
      %839 = vperm.xlu0 %838, %v831
      %v840 = vpop.permute.xlu0 %839
      %v843 = vsel %vm444, %v828, 0
      %v846 = vsel %vm444, %v829, 0
      %848 = vmatpush.msra.mxu0 0.0
      %849 = vmatpush.msra.mxu0 0.0
      %850 = vmatpush.msra.mxu0 0.0
      %851 = vmatpush.msra.mxu0 0.0
      %852 = vmatpush.msra.mxu0 0.0
      %853 = vmatpush.msra.mxu0 0.0
      %854 = vmatpush.msra.mxu0 0.0
      %855 = vmatpush.msra.mxu0 0.0
      %856 = vmatpush.msra.mxu0 0.0
      %857 = vmatpush.msra.mxu0 0.0
      %858 = vmatpush.msra.mxu0 0.0
      %859 = vmatpush.msra.mxu0 0.0
      %860 = vmatpush.msra.mxu0 0.0
      %861 = vmatpush.msra.mxu0 0.0
      %862 = vmatpush.msra.mxu0 %v803
      %863 = vmatpush.msra.mxu0 %v800
      %864 = vmatmul.f32.gmra.mxu0 %v843
      %v865 = vpop.f32.mrf.mxu0
      %v866 = vadd.f32 %v835, %v865
      %867 = vmatmul.f32.gmra.mxu0 %v846
      %v868 = vpop.f32.mrf.mxu0
      %v869 = vadd.f32 %v840, %v868
      %870 = vdwg.mxu0
      %871 = vmatpush.msra.mxu0 0.0
      %872 = vmatpush.msra.mxu0 0.0
      %873 = vmatpush.msra.mxu0 0.0
      %874 = vmatpush.msra.mxu0 0.0
      %875 = vmatpush.msra.mxu0 0.0
      %876 = vmatpush.msra.mxu0 0.0
      %877 = vmatpush.msra.mxu0 0.0
      %878 = vmatpush.msra.mxu0 0.0
      %879 = vmatpush.msra.mxu0 0.0
      %880 = vmatpush.msra.mxu0 0.0
      %881 = vmatpush.msra.mxu0 0.0
      %882 = vmatpush.msra.mxu0 0.0
      %883 = vmatpush.msra.mxu0 0.0
      %884 = vmatpush.msra.mxu0 0.0
      %885 = vmatpush.msra.mxu0 %v826
      %886 = vmatpush.msra.mxu0 %v823
      %887 = vmatmul.f32.gmra.mxu0 %v843
      %v888 = vpop.f32.mrf.mxu0
      %v889 = vadd.f32 %v835, %v888
      %890 = vmatmul.f32.gmra.mxu0 %v846
      %v891 = vpop.f32.mrf.mxu0
      %v892 = vadd.f32 %v840, %v891
      %893 = vdwg.mxu0
      %v894 = vld [vmem:[%s6] sm:$0xff]
      %v895 = vld [vmem:[%s6 + $0x8] sm:$0xff]
      %v896 = vld [vmem:[%s7] sm:$0xff]
      %v897 = vld [vmem:[%s7 + $0x8] sm:$0xff]
      %899 = vset.pattern.permute.xlu0 0
      %900 = vperm.xlu0 %899, %v896
      %v901 = vpop.permute.xlu0 %900
      %904 = vset.pattern.permute.xlu0 0
      %905 = vperm.xlu0 %904, %v897
      %v906 = vpop.permute.xlu0 %905
      %v909 = vsel %vm444, %v894, 0
      %v912 = vsel %vm444, %v895, 0
      %914 = vmatpush.msra.mxu0 0.0
      %915 = vmatpush.msra.mxu0 0.0
      %916 = vmatpush.msra.mxu0 0.0
      %917 = vmatpush.msra.mxu0 0.0
      %918 = vmatpush.msra.mxu0 0.0
      %919 = vmatpush.msra.mxu0 0.0
      %920 = vmatpush.msra.mxu0 0.0
      %921 = vmatpush.msra.mxu0 0.0
      %922 = vmatpush.msra.mxu0 0.0
      %923 = vmatpush.msra.mxu0 0.0
      %924 = vmatpush.msra.mxu0 0.0
      %925 = vmatpush.msra.mxu0 0.0
      %926 = vmatpush.msra.mxu0 0.0
      %927 = vmatpush.msra.mxu0 0.0
      %928 = vmatpush.msra.mxu0 %v515
      %929 = vmatpush.msra.mxu0 %v512
      %930 = vmatmul.f32.gmra.mxu0 %v909
      %v931 = vpop.f32.mrf.mxu0
      %v932 = vadd.f32 %v901, %v931
      %933 = vmatmul.f32.gmra.mxu0 %v912
      %v934 = vpop.f32.mrf.mxu0
      %v935 = vadd.f32 %v906, %v934
      %936 = vdwg.mxu0
      %937 = vmatpush.msra.mxu0 0.0
      %938 = vmatpush.msra.mxu0 0.0
      %939 = vmatpush.msra.mxu0 0.0
      %940 = vmatpush.msra.mxu0 0.0
      %941 = vmatpush.msra.mxu0 0.0
      %942 = vmatpush.msra.mxu0 0.0
      %943 = vmatpush.msra.mxu0 0.0
      %944 = vmatpush.msra.mxu0 0.0
      %945 = vmatpush.msra.mxu0 0.0
      %946 = vmatpush.msra.mxu0 0.0
      %947 = vmatpush.msra.mxu0 0.0
      %948 = vmatpush.msra.mxu0 0.0
      %949 = vmatpush.msra.mxu0 0.0
      %950 = vmatpush.msra.mxu0 0.0
      %951 = vmatpush.msra.mxu0 %v538
      %952 = vmatpush.msra.mxu0 %v535
      %953 = vmatmul.f32.gmra.mxu0 %v909
      %v954 = vpop.f32.mrf.mxu0
      %v955 = vadd.f32 %v901, %v954
      %956 = vmatmul.f32.gmra.mxu0 %v912
      %v957 = vpop.f32.mrf.mxu0
      %v958 = vadd.f32 %v906, %v957
      %959 = vdwg.mxu0
      %v960 = vlaneseq
      %v961 = vand.u32 %v960, 127
      %v962 = vadd.s32 %v961, 128
      %vm963 = vcmp.lt.s32.totalorder %v961, 0
      %v964 = vsub.s32 0, %v961
      %v965 = vsel %vm963, %v964, %v961
      %v966 = vshrl.u32 %v965, 4
      %v967 = vand.u32 %v965, 15
      %v968 = vsub.s32 0, %v967
      %v969 = vsel %vm963, %v968, %v967
      %vm970 = vcmp.lt.s32.totalorder %v962, 0
      %v971 = vsub.s32 0, %v962
      %v972 = vsel %vm970, %v971, %v962
      %v973 = vshrl.u32 %v972, 4
      %v974 = vand.u32 %v972, 15
      %v975 = vsub.s32 0, %v974
      %v976 = vsel %vm970, %v975, %v974
      %vm977 = vcmp.ne.s32.totalorder %v969, 0
      %vm978 = vcmp.ne.s32.totalorder %v976, 0
      %vm979 = vcmp.lt.s32.totalorder %v969, 0
      %vm980 = vcmp.lt.s32.totalorder %v976, 0
      %vm981 = vmand %vm979, %vm977
      %vm982 = vmand %vm980, %vm978
      %v983 = vadd.s32 %v969, 16
      %v984 = vadd.s32 %v976, 16
      %v985 = vsel %vm981, %v983, %v969
      %v986 = vsel %vm982, %v984, %v976
      %vm987 = vcmp.gt.s32.totalorder %v985, 0
      %vm988 = vcmp.gt.s32.totalorder %v986, 0
      %v989 = vsel %vm987, 1, 0
      %v990 = vsel %vm988, 1, 0
      %v991 = vcvt.s32.f32 %v989
      %v992 = vcvt.s32.f32 %v990
      %vm993 = vcmp.lt.s32.totalorder %v985, 15
      %vm994 = vcmp.lt.s32.totalorder %v986, 15
      %v995 = vsel %vm993, 1, 0
      %v996 = vsel %vm994, 1, 0
      %v997 = vcvt.s32.f32 %v995
      %v998 = vcvt.s32.f32 %v996
      %1003 = vrot.lane.b32.xlu0 %v932, 1
      %v1004 = vpop.permute.xlu0 %1003
      %1005 = vrot.lane.b32.xlu0 %v955, 1
      %v1006 = vpop.permute.xlu0 %1005
      %1007 = vrot.lane.b32.xlu0 %v935, 1
      %v1008 = vpop.permute.xlu0 %1007
      %1009 = vrot.lane.b32.xlu0 %v958, 1
      %v1010 = vpop.permute.xlu0 %1009
      %vm1011 = vcmask 7168
      %v1012 = vsel %vm1011, %v1004, %v1006
      %v1013 = vsel %vm1011, %v1008, %v1010
      %v1018 = vsel %vm1011, 0.0, %v1004
      %v1019 = vsel %vm1011, 0.0, %v1008
      %v1020 = vmul.f32 %v991, %v1018
      %v1021 = vmul.f32 %v992, %v1012
      %v1022 = vmul.f32 %v991, %v1019
      %v1023 = vmul.f32 %v992, %v1013
      %1024 = vrot.lane.b32.xlu0 %v932, 127
      %v1025 = vpop.permute.xlu0 %1024
      %1026 = vrot.lane.b32.xlu0 %v955, 127
      %v1027 = vpop.permute.xlu0 %1026
      %1028 = vrot.lane.b32.xlu0 %v935, 127
      %v1029 = vpop.permute.xlu0 %1028
      %1030 = vrot.lane.b32.xlu0 %v958, 127
      %v1031 = vpop.permute.xlu0 %1030
      %vm1032 = vcmask 1039360
      %v1033 = vsel %vm1032, %v1025, %v1027
      %v1034 = vsel %vm1032, %v1029, %v1031
      %v1039 = vsel %vm1032, %v1027, 0.0
      %v1040 = vsel %vm1032, %v1031, 0.0
      %v1041 = vmul.f32 %v997, %v1033
      %v1042 = vmul.f32 %v998, %v1039
      %v1043 = vmul.f32 %v997, %v1034
      %v1044 = vmul.f32 %v998, %v1040
      %v1045 = vld [vmem:[%s10] sm:$0xff]
      %v1046 = vld [vmem:[%s10 + $0x8] sm:$0xff]
      %1048 = vset.pattern.permute.xlu0 0
      %1049 = vperm.xlu0 %1048, %v1045
      %v1050 = vpop.permute.xlu0 %1049
      %1053 = vset.pattern.permute.xlu0 0
      %1054 = vperm.xlu0 %1053, %v1046
      %v1055 = vpop.permute.xlu0 %1054
      %v1057 = vmul.f32 %v1020, %v1050
      %v1058 = vmul.f32 %v1021, %v1050
      %v1059 = vmul.f32 %v1022, %v1055
      %v1060 = vmul.f32 %v1023, %v1055
      %s1061 = scalar_lea.vmem %s10, 16
      %v1062 = vld [vmem:[%s1061] sm:$0xff]
      %v1063 = vld [vmem:[%s1061 + $0x8] sm:$0xff]
      %1065 = vset.pattern.permute.xlu0 0
      %1066 = vperm.xlu0 %1065, %v1062
      %v1067 = vpop.permute.xlu0 %1066
      %1070 = vset.pattern.permute.xlu0 0
      %1071 = vperm.xlu0 %1070, %v1063
      %v1072 = vpop.permute.xlu0 %1071
      %v1074 = vmul.f32 %v932, %v1067
      %v1075 = vmul.f32 %v955, %v1067
      %v1076 = vmul.f32 %v935, %v1072
      %v1077 = vmul.f32 %v958, %v1072
      %v1078 = vadd.f32 %v1057, %v1074
      %v1079 = vadd.f32 %v1058, %v1075
      %v1080 = vadd.f32 %v1059, %v1076
      %v1081 = vadd.f32 %v1060, %v1077
      %s1082 = scalar_lea.vmem %s10, 32
      %v1083 = vld [vmem:[%s1082] sm:$0xff]
      %v1084 = vld [vmem:[%s1082 + $0x8] sm:$0xff]
      %1086 = vset.pattern.permute.xlu0 0
      %1087 = vperm.xlu0 %1086, %v1083
      %v1088 = vpop.permute.xlu0 %1087
      %1091 = vset.pattern.permute.xlu0 0
      %1092 = vperm.xlu0 %1091, %v1084
      %v1093 = vpop.permute.xlu0 %1092
      %v1095 = vmul.f32 %v1041, %v1088
      %v1096 = vmul.f32 %v1042, %v1088
      %v1097 = vmul.f32 %v1043, %v1093
      %v1098 = vmul.f32 %v1044, %v1093
      %v1099 = vadd.f32 %v1078, %v1095
      %v1100 = vadd.f32 %v1079, %v1096
      %v1101 = vadd.f32 %v1080, %v1097
      %v1102 = vadd.f32 %v1081, %v1098
      %s1103 = scalar_lea.vmem %s10, 48
      %v1104 = vld [vmem:[%s1103] sm:$0xff]
      %v1105 = vld [vmem:[%s1103 + $0x8] sm:$0xff]
      %1107 = vset.pattern.permute.xlu0 0
      %1108 = vperm.xlu0 %1107, %v1104
      %v1109 = vpop.permute.xlu0 %1108
      %1112 = vset.pattern.permute.xlu0 0
      %1113 = vperm.xlu0 %1112, %v1105
      %v1114 = vpop.permute.xlu0 %1113
      %v1116 = vmul.f32 %v1020, %v1109
      %v1117 = vmul.f32 %v1021, %v1109
      %v1118 = vmul.f32 %v1022, %v1114
      %v1119 = vmul.f32 %v1023, %v1114
      %s1120 = scalar_lea.vmem %s10, 64
      %v1121 = vld [vmem:[%s1120] sm:$0xff]
      %v1122 = vld [vmem:[%s1120 + $0x8] sm:$0xff]
      %1124 = vset.pattern.permute.xlu0 0
      %1125 = vperm.xlu0 %1124, %v1121
      %v1126 = vpop.permute.xlu0 %1125
      %1129 = vset.pattern.permute.xlu0 0
      %1130 = vperm.xlu0 %1129, %v1122
      %v1131 = vpop.permute.xlu0 %1130
      %v1133 = vmul.f32 %v932, %v1126
      %v1134 = vmul.f32 %v955, %v1126
      %v1135 = vmul.f32 %v935, %v1131
      %v1136 = vmul.f32 %v958, %v1131
      %v1137 = vadd.f32 %v1116, %v1133
      %v1138 = vadd.f32 %v1117, %v1134
      %v1139 = vadd.f32 %v1118, %v1135
      %v1140 = vadd.f32 %v1119, %v1136
      %s1141 = scalar_lea.vmem %s10, 80
      %v1142 = vld [vmem:[%s1141] sm:$0xff]
      %v1143 = vld [vmem:[%s1141 + $0x8] sm:$0xff]
      %1145 = vset.pattern.permute.xlu0 0
      %1146 = vperm.xlu0 %1145, %v1142
      %v1147 = vpop.permute.xlu0 %1146
      %1150 = vset.pattern.permute.xlu0 0
      %1151 = vperm.xlu0 %1150, %v1143
      %v1152 = vpop.permute.xlu0 %1151
      %v1154 = vmul.f32 %v1041, %v1147
      %v1155 = vmul.f32 %v1042, %v1147
      %v1156 = vmul.f32 %v1043, %v1152
      %v1157 = vmul.f32 %v1044, %v1152
      %v1158 = vadd.f32 %v1137, %v1154
      %v1159 = vadd.f32 %v1138, %v1155
      %v1160 = vadd.f32 %v1139, %v1156
      %v1161 = vadd.f32 %v1140, %v1157
      %s1162 = scalar_lea.vmem %s10, 96
      %v1163 = vld [vmem:[%s1162] sm:$0xff]
      %v1164 = vld [vmem:[%s1162 + $0x8] sm:$0xff]
      %1166 = vset.pattern.permute.xlu0 0
      %1167 = vperm.xlu0 %1166, %v1163
      %v1168 = vpop.permute.xlu0 %1167
      %1171 = vset.pattern.permute.xlu0 0
      %1172 = vperm.xlu0 %1171, %v1164
      %v1173 = vpop.permute.xlu0 %1172
      %v1175 = vmul.f32 %v1020, %v1168
      %v1176 = vmul.f32 %v1021, %v1168
      %v1177 = vmul.f32 %v1022, %v1173
      %v1178 = vmul.f32 %v1023, %v1173
      %s1179 = scalar_lea.vmem %s10, 112
      %v1180 = vld [vmem:[%s1179] sm:$0xff]
      %v1181 = vld [vmem:[%s1179 + $0x8] sm:$0xff]
      %1183 = vset.pattern.permute.xlu0 0
      %1184 = vperm.xlu0 %1183, %v1180
      %v1185 = vpop.permute.xlu0 %1184
      %1188 = vset.pattern.permute.xlu0 0
      %1189 = vperm.xlu0 %1188, %v1181
      %v1190 = vpop.permute.xlu0 %1189
      %v1192 = vmul.f32 %v932, %v1185
      %v1193 = vmul.f32 %v955, %v1185
      %v1194 = vmul.f32 %v935, %v1190
      %v1195 = vmul.f32 %v958, %v1190
      %v1196 = vadd.f32 %v1175, %v1192
      %v1197 = vadd.f32 %v1176, %v1193
      %v1198 = vadd.f32 %v1177, %v1194
      %v1199 = vadd.f32 %v1178, %v1195
      %s1200 = scalar_lea.vmem %s10, 128
      %v1201 = vld [vmem:[%s1200] sm:$0xff]
      %v1202 = vld [vmem:[%s1200 + $0x8] sm:$0xff]
      %1204 = vset.pattern.permute.xlu0 0
      %1205 = vperm.xlu0 %1204, %v1201
      %v1206 = vpop.permute.xlu0 %1205
      %1209 = vset.pattern.permute.xlu0 0
      %1210 = vperm.xlu0 %1209, %v1202
      %v1211 = vpop.permute.xlu0 %1210
      %v1213 = vmul.f32 %v1041, %v1206
      %v1214 = vmul.f32 %v1042, %v1206
      %v1215 = vmul.f32 %v1043, %v1211
      %v1216 = vmul.f32 %v1044, %v1211
      %v1217 = vadd.f32 %v1196, %v1213
      %v1218 = vadd.f32 %v1197, %v1214
      %v1219 = vadd.f32 %v1198, %v1215
      %v1220 = vadd.f32 %v1199, %v1216
      %1225 = vrot.lane.b32.xlu0 %v1099, 16
      %v1226 = vpop.permute.xlu0 %1225
      %1227 = vrot.lane.b32.xlu0 %v1100, 16
      %v1228 = vpop.permute.xlu0 %1227
      %1229 = vrot.lane.b32.xlu0 %v1101, 16
      %v1230 = vpop.permute.xlu0 %1229
      %1231 = vrot.lane.b32.xlu0 %v1102, 16
      %v1232 = vpop.permute.xlu0 %1231
      %v1233 = vsel %vm444, %v1226, %v1228
      %v1234 = vsel %vm444, %v1230, %v1232
      %v1239 = vsel %vm444, 0.0, %v1226
      %v1240 = vsel %vm444, 0.0, %v1230
      %v1241 = vadd.f32 %v1239, %v1158
      %v1242 = vadd.f32 %v1233, %v1159
      %v1243 = vadd.f32 %v1240, %v1160
      %v1244 = vadd.f32 %v1234, %v1161
      %1249 = vrot.lane.b32.xlu0 %v1217, 112
      %v1250 = vpop.permute.xlu0 %1249
      %1251 = vrot.lane.b32.xlu0 %v1218, 112
      %v1252 = vpop.permute.xlu0 %1251
      %1253 = vrot.lane.b32.xlu0 %v1219, 112
      %v1254 = vpop.permute.xlu0 %1253
      %1255 = vrot.lane.b32.xlu0 %v1220, 112
      %v1256 = vpop.permute.xlu0 %1255
      %vm1257 = vcmask 916480
      %v1258 = vsel %vm1257, %v1250, %v1252
      %v1259 = vsel %vm1257, %v1254, %v1256
      %v1264 = vsel %vm1257, %v1252, 0.0
      %v1265 = vsel %vm1257, %v1256, 0.0
      %v1266 = vadd.f32 %v1241, %v1258
      %v1267 = vadd.f32 %v1242, %v1264
      %v1268 = vadd.f32 %v1243, %v1259
      %v1269 = vadd.f32 %v1244, %v1265
      %v1270 = vmul.f32 %v1266, 0.5
      %v1271 = vmul.f32 %v1267, 0.5
      %v1272 = vmul.f32 %v1268, 0.5
      %v1273 = vmul.f32 %v1269, 0.5
      %v1274 = vmul.f32 %v1266, 0.70710677
      %v1275 = vmul.f32 %v1267, 0.70710677
      %v1276 = vmul.f32 %v1268, 0.70710677
      %v1277 = vmul.f32 %v1269, 0.70710677
      %v1278 = vand.u32 2147483647, %v1274
      %v1279 = vand.u32 2147483647, %v1275
      %v1280 = vand.u32 2147483647, %v1276
      %v1281 = vand.u32 2147483647, %v1277
      %v1282 = vmul.f32 %v1278, 0.3275911
      %v1283 = vmul.f32 %v1279, 0.3275911
      %v1284 = vmul.f32 %v1280, 0.3275911
      %v1285 = vmul.f32 %v1281, 0.3275911
      %v1286 = vadd.f32 %v1282, 1.0
      %v1287 = vadd.f32 %v1283, 1.0
      %v1288 = vadd.f32 %v1284, 1.0
      %v1289 = vadd.f32 %v1285, 1.0
      %v1290 = vrcp.pop %v1286
      %v1291 = vmul.f32 %v1286, %v1290
      %v1292 = vsub.f32 1.0, %v1291
      %v1293 = vmul.f32 %v1290, %v1292
      %v1294 = vadd.f32 %v1290, %v1293
      %vm1295 = vweird.f32 %v1286
      %vm1296 = vweird.f32 %v1290
      %vm1297 = vmor %vm1295, %vm1296
      %v1298 = vsel %vm1297, %v1290, %v1294
      %v1299 = vand.u32 2147483647, %v1286
      %vm1300 = vcmp.eq.f32.partialorder %v1299, 8.507059e+37
      %v1301 = vand.u32 %v1286, 2147483648
      %v1302 = vor.u32 1.1754944e-38, %v1301
      %v1303 = vsel %vm1300, %v1302, %v1298
      %v1304 = vmul.f32 1.0, %v1303
      %v1305 = vrcp.pop %v1287
      %v1306 = vmul.f32 %v1287, %v1305
      %v1307 = vsub.f32 1.0, %v1306
      %v1308 = vmul.f32 %v1305, %v1307
      %v1309 = vadd.f32 %v1305, %v1308
      %vm1310 = vweird.f32 %v1287
      %vm1311 = vweird.f32 %v1305
      %vm1312 = vmor %vm1310, %vm1311
      %v1313 = vsel %vm1312, %v1305, %v1309
      %v1314 = vand.u32 2147483647, %v1287
      %vm1315 = vcmp.eq.f32.partialorder %v1314, 8.507059e+37
      %v1316 = vand.u32 %v1287, 2147483648
      %v1317 = vor.u32 1.1754944e-38, %v1316
      %v1318 = vsel %vm1315, %v1317, %v1313
      %v1319 = vmul.f32 1.0, %v1318
      %v1320 = vrcp.pop %v1288
      %v1321 = vmul.f32 %v1288, %v1320
      %v1322 = vsub.f32 1.0, %v1321
      %v1323 = vmul.f32 %v1320, %v1322
      %v1324 = vadd.f32 %v1320, %v1323
      %vm1325 = vweird.f32 %v1288
      %vm1326 = vweird.f32 %v1320
      %vm1327 = vmor %vm1325, %vm1326
      %v1328 = vsel %vm1327, %v1320, %v1324
      %v1329 = vand.u32 2147483647, %v1288
      %vm1330 = vcmp.eq.f32.partialorder %v1329, 8.507059e+37
      %v1331 = vand.u32 %v1288, 2147483648
      %v1332 = vor.u32 1.1754944e-38, %v1331
      %v1333 = vsel %vm1330, %v1332, %v1328
      %v1334 = vmul.f32 1.0, %v1333
      %v1335 = vrcp.pop %v1289
      %v1336 = vmul.f32 %v1289, %v1335
      %v1337 = vsub.f32 1.0, %v1336
      %v1338 = vmul.f32 %v1335, %v1337
      %v1339 = vadd.f32 %v1335, %v1338
      %vm1340 = vweird.f32 %v1289
      %vm1341 = vweird.f32 %v1335
      %vm1342 = vmor %vm1340, %vm1341
      %v1343 = vsel %vm1342, %v1335, %v1339
      %v1344 = vand.u32 2147483647, %v1289
      %vm1345 = vcmp.eq.f32.partialorder %v1344, 8.507059e+37
      %v1346 = vand.u32 %v1289, 2147483648
      %v1347 = vor.u32 1.1754944e-38, %v1346
      %v1348 = vsel %vm1345, %v1347, %v1343
      %v1349 = vmul.f32 1.0, %v1348
      %v1350 = vmul.f32 %v1304, 1.0614054
      %v1351 = vmul.f32 %v1319, 1.0614054
      %v1352 = vmul.f32 %v1334, 1.0614054
      %v1353 = vmul.f32 %v1349, 1.0614054
      %v1354 = vadd.f32 %v1350, -1.4531521
      %v1355 = vadd.f32 %v1351, -1.4531521
      %v1356 = vadd.f32 %v1352, -1.4531521
      %v1357 = vadd.f32 %v1353, -1.4531521
      %v1358 = vmul.f32 %v1354, %v1304
      %v1359 = vmul.f32 %v1355, %v1319
      %v1360 = vmul.f32 %v1356, %v1334
      %v1361 = vmul.f32 %v1357, %v1349
      %v1362 = vadd.f32 %v1358, 1.4214138
      %v1363 = vadd.f32 %v1359, 1.4214138
      %v1364 = vadd.f32 %v1360, 1.4214138
      %v1365 = vadd.f32 %v1361, 1.4214138
      %v1366 = vmul.f32 %v1362, %v1304
      %v1367 = vmul.f32 %v1363, %v1319
      %v1368 = vmul.f32 %v1364, %v1334
      %v1369 = vmul.f32 %v1365, %v1349
      %v1370 = vadd.f32 %v1366, -0.28449672
      %v1371 = vadd.f32 %v1367, -0.28449672
      %v1372 = vadd.f32 %v1368, -0.28449672
      %v1373 = vadd.f32 %v1369, -0.28449672
      %v1374 = vmul.f32 %v1370, %v1304
      %v1375 = vmul.f32 %v1371, %v1319
      %v1376 = vmul.f32 %v1372, %v1334
      %v1377 = vmul.f32 %v1373, %v1349
      %v1378 = vadd.f32 %v1374, 0.2548296
      %v1379 = vadd.f32 %v1375, 0.2548296
      %v1380 = vadd.f32 %v1376, 0.2548296
      %v1381 = vadd.f32 %v1377, 0.2548296
      %v1382 = vmul.f32 %v1378, %v1304
      %v1383 = vmul.f32 %v1379, %v1319
      %v1384 = vmul.f32 %v1380, %v1334
      %v1385 = vmul.f32 %v1381, %v1349
      %v1386 = vsub.f32 0.0, %v1278
      %v1387 = vsub.f32 0.0, %v1279
      %v1388 = vsub.f32 0.0, %v1280
      %v1389 = vsub.f32 0.0, %v1281
      %v1390 = vmul.f32 %v1386, %v1278
      %v1391 = vmul.f32 %v1387, %v1279
      %v1392 = vmul.f32 %v1388, %v1280
      %v1393 = vmul.f32 %v1389, %v1281
      %v1394 = vmul.f32 %v1390, 1.442695
      %v1395 = vpow.pop %v1394
      %v1396 = vmul.f32 %v1391, 1.442695
      %v1397 = vpow.pop %v1396
      %v1398 = vmul.f32 %v1392, 1.442695
      %v1399 = vpow.pop %v1398
      %v1400 = vmul.f32 %v1393, 1.442695
      %v1401 = vpow.pop %v1400
      %v1402 = vmul.f32 %v1382, %v1395
      %v1403 = vmul.f32 %v1383, %v1397
      %v1404 = vmul.f32 %v1384, %v1399
      %v1405 = vmul.f32 %v1385, %v1401
      %v1406 = vsub.f32 1.0, %v1402
      %v1407 = vsub.f32 1.0, %v1403
      %v1408 = vsub.f32 1.0, %v1404
      %v1409 = vsub.f32 1.0, %v1405
      %vm1410 = vcmp.ge.f32.partialorder %v1274, 0.0
      %vm1411 = vcmp.ge.f32.partialorder %v1275, 0.0
      %vm1412 = vcmp.ge.f32.partialorder %v1276, 0.0
      %vm1413 = vcmp.ge.f32.partialorder %v1277, 0.0
      %v1414 = vsub.f32 0.0, %v1406
      %v1415 = vsub.f32 0.0, %v1407
      %v1416 = vsub.f32 0.0, %v1408
      %v1417 = vsub.f32 0.0, %v1409
      %v1418 = vsel %vm1410, %v1406, %v1414
      %v1419 = vsel %vm1411, %v1407, %v1415
      %v1420 = vsel %vm1412, %v1408, %v1416
      %v1421 = vsel %vm1413, %v1409, %v1417
      %v1422 = vadd.f32 %v1418, 1.0
      %v1423 = vadd.f32 %v1419, 1.0
      %v1424 = vadd.f32 %v1420, 1.0
      %v1425 = vadd.f32 %v1421, 1.0
      %v1426 = vmul.f32 %v1270, %v1422
      %v1427 = vmul.f32 %v1271, %v1423
      %v1428 = vmul.f32 %v1272, %v1424
      %v1429 = vmul.f32 %v1273, %v1425
      %1434 = vrot.lane.b32.xlu0 %v1426, 1
      %v1435 = vpop.permute.xlu0 %1434
      %1436 = vrot.lane.b32.xlu0 %v1427, 1
      %v1437 = vpop.permute.xlu0 %1436
      %1438 = vrot.lane.b32.xlu0 %v1428, 1
      %v1439 = vpop.permute.xlu0 %1438
      %1440 = vrot.lane.b32.xlu0 %v1429, 1
      %v1441 = vpop.permute.xlu0 %1440
      %v1442 = vsel %vm1011, %v1435, %v1437
      %v1443 = vsel %vm1011, %v1439, %v1441
      %v1448 = vsel %vm1011, 0.0, %v1435
      %v1449 = vsel %vm1011, 0.0, %v1439
      %v1450 = vmul.f32 %v991, %v1448
      %v1451 = vmul.f32 %v992, %v1442
      %v1452 = vmul.f32 %v991, %v1449
      %v1453 = vmul.f32 %v992, %v1443
      %1454 = vrot.lane.b32.xlu0 %v1426, 127
      %v1455 = vpop.permute.xlu0 %1454
      %1456 = vrot.lane.b32.xlu0 %v1427, 127
      %v1457 = vpop.permute.xlu0 %1456
      %1458 = vrot.lane.b32.xlu0 %v1428, 127
      %v1459 = vpop.permute.xlu0 %1458
      %1460 = vrot.lane.b32.xlu0 %v1429, 127
      %v1461 = vpop.permute.xlu0 %1460
      %v1462 = vsel %vm1032, %v1455, %v1457
      %v1463 = vsel %vm1032, %v1459, %v1461
      %v1468 = vsel %vm1032, %v1457, 0.0
      %v1469 = vsel %vm1032, %v1461, 0.0
      %v1470 = vmul.f32 %v997, %v1462
      %v1471 = vmul.f32 %v998, %v1468
      %v1472 = vmul.f32 %v997, %v1463
      %v1473 = vmul.f32 %v998, %v1469
      %v1474 = vld [vmem:[%s11] sm:$0xff]
      %v1475 = vld [vmem:[%s11 + $0x8] sm:$0xff]
      %1477 = vset.pattern.permute.xlu0 0
      %1478 = vperm.xlu0 %1477, %v1474
      %v1479 = vpop.permute.xlu0 %1478
      %1482 = vset.pattern.permute.xlu0 0
      %1483 = vperm.xlu0 %1482, %v1475
      %v1484 = vpop.permute.xlu0 %1483
      %v1486 = vmul.f32 %v1450, %v1479
      %v1487 = vmul.f32 %v1451, %v1479
      %v1488 = vmul.f32 %v1452, %v1484
      %v1489 = vmul.f32 %v1453, %v1484
      %s1490 = scalar_lea.vmem %s11, 16
      %v1491 = vld [vmem:[%s1490] sm:$0xff]
      %v1492 = vld [vmem:[%s1490 + $0x8] sm:$0xff]
      %1494 = vset.pattern.permute.xlu0 0
      %1495 = vperm.xlu0 %1494, %v1491
      %v1496 = vpop.permute.xlu0 %1495
      %1499 = vset.pattern.permute.xlu0 0
      %1500 = vperm.xlu0 %1499, %v1492
      %v1501 = vpop.permute.xlu0 %1500
      %v1503 = vmul.f32 %v1426, %v1496
      %v1504 = vmul.f32 %v1427, %v1496
      %v1505 = vmul.f32 %v1428, %v1501
      %v1506 = vmul.f32 %v1429, %v1501
      %v1507 = vadd.f32 %v1486, %v1503
      %v1508 = vadd.f32 %v1487, %v1504
      %v1509 = vadd.f32 %v1488, %v1505
      %v1510 = vadd.f32 %v1489, %v1506
      %s1511 = scalar_lea.vmem %s11, 32
      %v1512 = vld [vmem:[%s1511] sm:$0xff]
      %v1513 = vld [vmem:[%s1511 + $0x8] sm:$0xff]
      %1515 = vset.pattern.permute.xlu0 0
      %1516 = vperm.xlu0 %1515, %v1512
      %v1517 = vpop.permute.xlu0 %1516
      %1520 = vset.pattern.permute.xlu0 0
      %1521 = vperm.xlu0 %1520, %v1513
      %v1522 = vpop.permute.xlu0 %1521
      %v1524 = vmul.f32 %v1470, %v1517
      %v1525 = vmul.f32 %v1471, %v1517
      %v1526 = vmul.f32 %v1472, %v1522
      %v1527 = vmul.f32 %v1473, %v1522
      %v1528 = vadd.f32 %v1507, %v1524
      %v1529 = vadd.f32 %v1508, %v1525
      %v1530 = vadd.f32 %v1509, %v1526
      %v1531 = vadd.f32 %v1510, %v1527
      %s1532 = scalar_lea.vmem %s11, 48
      %v1533 = vld [vmem:[%s1532] sm:$0xff]
      %v1534 = vld [vmem:[%s1532 + $0x8] sm:$0xff]
      %1536 = vset.pattern.permute.xlu0 0
      %1537 = vperm.xlu0 %1536, %v1533
      %v1538 = vpop.permute.xlu0 %1537
      %1541 = vset.pattern.permute.xlu0 0
      %1542 = vperm.xlu0 %1541, %v1534
      %v1543 = vpop.permute.xlu0 %1542
      %v1545 = vmul.f32 %v1450, %v1538
      %v1546 = vmul.f32 %v1451, %v1538
      %v1547 = vmul.f32 %v1452, %v1543
      %v1548 = vmul.f32 %v1453, %v1543
      %s1549 = scalar_lea.vmem %s11, 64
      %v1550 = vld [vmem:[%s1549] sm:$0xff]
      %v1551 = vld [vmem:[%s1549 + $0x8] sm:$0xff]
      %1553 = vset.pattern.permute.xlu0 0
      %1554 = vperm.xlu0 %1553, %v1550
      %v1555 = vpop.permute.xlu0 %1554
      %1558 = vset.pattern.permute.xlu0 0
      %1559 = vperm.xlu0 %1558, %v1551
      %v1560 = vpop.permute.xlu0 %1559
      %v1562 = vmul.f32 %v1426, %v1555
      %v1563 = vmul.f32 %v1427, %v1555
      %v1564 = vmul.f32 %v1428, %v1560
      %v1565 = vmul.f32 %v1429, %v1560
      %v1566 = vadd.f32 %v1545, %v1562
      %v1567 = vadd.f32 %v1546, %v1563
      %v1568 = vadd.f32 %v1547, %v1564
      %v1569 = vadd.f32 %v1548, %v1565
      %s1570 = scalar_lea.vmem %s11, 80
      %v1571 = vld [vmem:[%s1570] sm:$0xff]
      %v1572 = vld [vmem:[%s1570 + $0x8] sm:$0xff]
      %1574 = vset.pattern.permute.xlu0 0
      %1575 = vperm.xlu0 %1574, %v1571
      %v1576 = vpop.permute.xlu0 %1575
      %1579 = vset.pattern.permute.xlu0 0
      %1580 = vperm.xlu0 %1579, %v1572
      %v1581 = vpop.permute.xlu0 %1580
      %v1583 = vmul.f32 %v1470, %v1576
      %v1584 = vmul.f32 %v1471, %v1576
      %v1585 = vmul.f32 %v1472, %v1581
      %v1586 = vmul.f32 %v1473, %v1581
      %v1587 = vadd.f32 %v1566, %v1583
      %v1588 = vadd.f32 %v1567, %v1584
      %v1589 = vadd.f32 %v1568, %v1585
      %v1590 = vadd.f32 %v1569, %v1586
      %s1591 = scalar_lea.vmem %s11, 96
      %v1592 = vld [vmem:[%s1591] sm:$0xff]
      %v1593 = vld [vmem:[%s1591 + $0x8] sm:$0xff]
      %1595 = vset.pattern.permute.xlu0 0
      %1596 = vperm.xlu0 %1595, %v1592
      %v1597 = vpop.permute.xlu0 %1596
      %1600 = vset.pattern.permute.xlu0 0
      %1601 = vperm.xlu0 %1600, %v1593
      %v1602 = vpop.permute.xlu0 %1601
      %v1604 = vmul.f32 %v1450, %v1597
      %v1605 = vmul.f32 %v1451, %v1597
      %v1606 = vmul.f32 %v1452, %v1602
      %v1607 = vmul.f32 %v1453, %v1602
      %s1608 = scalar_lea.vmem %s11, 112
      %v1609 = vld [vmem:[%s1608] sm:$0xff]
      %v1610 = vld [vmem:[%s1608 + $0x8] sm:$0xff]
      %1612 = vset.pattern.permute.xlu0 0
      %1613 = vperm.xlu0 %1612, %v1609
      %v1614 = vpop.permute.xlu0 %1613
      %1617 = vset.pattern.permute.xlu0 0
      %1618 = vperm.xlu0 %1617, %v1610
      %v1619 = vpop.permute.xlu0 %1618
      %v1621 = vmul.f32 %v1426, %v1614
      %v1622 = vmul.f32 %v1427, %v1614
      %v1623 = vmul.f32 %v1428, %v1619
      %v1624 = vmul.f32 %v1429, %v1619
      %v1625 = vadd.f32 %v1604, %v1621
      %v1626 = vadd.f32 %v1605, %v1622
      %v1627 = vadd.f32 %v1606, %v1623
      %v1628 = vadd.f32 %v1607, %v1624
      %s1629 = scalar_lea.vmem %s11, 128
      %v1630 = vld [vmem:[%s1629] sm:$0xff]
      %v1631 = vld [vmem:[%s1629 + $0x8] sm:$0xff]
      %1633 = vset.pattern.permute.xlu0 0
      %1634 = vperm.xlu0 %1633, %v1630
      %v1635 = vpop.permute.xlu0 %1634
      %1638 = vset.pattern.permute.xlu0 0
      %1639 = vperm.xlu0 %1638, %v1631
      %v1640 = vpop.permute.xlu0 %1639
      %v1642 = vmul.f32 %v1470, %v1635
      %v1643 = vmul.f32 %v1471, %v1635
      %v1644 = vmul.f32 %v1472, %v1640
      %v1645 = vmul.f32 %v1473, %v1640
      %v1646 = vadd.f32 %v1625, %v1642
      %v1647 = vadd.f32 %v1626, %v1643
      %v1648 = vadd.f32 %v1627, %v1644
      %v1649 = vadd.f32 %v1628, %v1645
      %1654 = vrot.lane.b32.xlu0 %v1528, 16
      %v1655 = vpop.permute.xlu0 %1654
      %1656 = vrot.lane.b32.xlu0 %v1529, 16
      %v1657 = vpop.permute.xlu0 %1656
      %1658 = vrot.lane.b32.xlu0 %v1530, 16
      %v1659 = vpop.permute.xlu0 %1658
      %1660 = vrot.lane.b32.xlu0 %v1531, 16
      %v1661 = vpop.permute.xlu0 %1660
      %v1662 = vsel %vm444, %v1655, %v1657
      %v1663 = vsel %vm444, %v1659, %v1661
      %v1668 = vsel %vm444, 0.0, %v1655
      %v1669 = vsel %vm444, 0.0, %v1659
      %v1670 = vadd.f32 %v1668, %v1587
      %v1671 = vadd.f32 %v1662, %v1588
      %v1672 = vadd.f32 %v1669, %v1589
      %v1673 = vadd.f32 %v1663, %v1590
      %1678 = vrot.lane.b32.xlu0 %v1646, 112
      %v1679 = vpop.permute.xlu0 %1678
      %1680 = vrot.lane.b32.xlu0 %v1647, 112
      %v1681 = vpop.permute.xlu0 %1680
      %1682 = vrot.lane.b32.xlu0 %v1648, 112
      %v1683 = vpop.permute.xlu0 %1682
      %1684 = vrot.lane.b32.xlu0 %v1649, 112
      %v1685 = vpop.permute.xlu0 %1684
      %v1686 = vsel %vm1257, %v1679, %v1681
      %v1687 = vsel %vm1257, %v1683, %v1685
      %v1692 = vsel %vm1257, %v1681, 0.0
      %v1693 = vsel %vm1257, %v1685, 0.0
      %v1694 = vadd.f32 %v1670, %v1686
      %v1695 = vadd.f32 %v1671, %v1692
      %v1696 = vadd.f32 %v1672, %v1687
      %v1697 = vadd.f32 %v1673, %v1693
      %v1698 = vadd.f32 %v866, %v1694
      %v1699 = vadd.f32 %v889, %v1695
      %v1700 = vadd.f32 %v869, %v1696
      %v1701 = vadd.f32 %v892, %v1697
      %1702 = vst [vmem:[%s433] sm:$0xff] %v1698
      %1703 = vst [vmem:[%s433 + $0x8] sm:$0xff] %v1699
      %1704 = vst [vmem:[%s433 + $0x10] sm:$0xff] %v1700
      %1705 = vst [vmem:[%s433 + $0x18] sm:$0xff] %v1701
      %p1706 = scmp.lt.s32.totalorder %s23, 1
      %s1707 = scalar_select %p1706, %s23, 1
      %s1708 = smul.addr %s1707, 4
      %s1709 = smul.addr %s1708, 8
      %s1710 = scalar_lea.vmem %s12, %s1709
      // Predicated region
      $region69: #{ms_msa_forward.1} parent=67 // pred_check
        %p1711 = pneg %p303
      $region70: #{ms_msa_forward.1} parent=67 // pred_check_branch
        %1713 = sbr.rel (%p1711) target = $region72
      $region71: #{ms_msa_forward.1} parent=67 // pred_region
        _
      $region72: #{ms_msa_forward.1} parent=67 // pred_fallthru
        _
    $region68: #{ms_msa_forward.1} parent=5 // pred_fallthru
      _
    %p1714 = scmp.le.s32.totalorder 2, %s18
    // Predicated region
    $region73: #{ms_msa_forward.1} parent=5 // pred_check
      %p1715 = pneg %p1714
    $region74: #{ms_msa_forward.1} parent=5 // pred_check_branch
      %1717 = sbr.rel (%p1715) target = $region76
    $region75: #{ms_msa_forward.1} parent=5 // pred_region
      %s1718 = ssub.s32 %s18, 2
      // Predicated region
      $region77: #{ms_msa_forward.1} parent=75 // pred_check
        %p1719 = pneg %p309
      $region78: #{ms_msa_forward.1} parent=75 // pred_check_branch
        %1721 = sbr.rel (%p1719) target = $region80
      $region79: #{ms_msa_forward.1} parent=75 // pred_region
        %p1722 = scmp.lt.s32.totalorder %s24, 1
        %s1723 = scalar_select %p1722, %s24, 1
        %s1724 = smul.addr %s1723, 4
        %s1725 = smul.addr %s1724, 8
        %s1726 = scalar_lea.vmem %s12, %s1725
      $region80: #{ms_msa_forward.1} parent=75 // pred_fallthru
        _
    $region76: #{ms_msa_forward.1} parent=5 // pred_fallthru
      _
  $region6: #{ms_msa_forward.1} parent=0 // loop_footer
    %s22 = sadd.s32 1, %s18
  $region7: #{ms_msa_forward.1} parent=0 // loop_footer_branch
    %17 = sbr.rel target = $region3
  $region8: #{ms_msa_forward.1} parent=0 // loop_exit
    _

</llo_original>
